<compile_context>
chip_gen: v5e
topology: v5e:2x2
jax: 0.10.0
libtpu: 0.0.40
codegen_flags: <defaults>
</compile_context>

<pallas_src>
import functools

import jax
import jax.numpy as jnp
import numpy as np
from jax.experimental import pallas as pl
from jax.experimental.pallas import tpu as pltpu

# Streams with fewer rows than this are cheaper in plain JAX than paying a
# pallas_call launch + single-tile grid (review: crossover is O(1e3) rows).
_MIN_ROWS_FOR_PALLAS = 1024


def _round_up(x, m):
    return ((x + m - 1) // m) * m


def _tpu_lane_target_and_vmem():
    """Return (lane-pack target width, per-TensorCore VMEM capacity bytes)."""
    lane_target, vmem_cap = 128, 128 << 20
    kind = ""
    try:
        kind = jax.devices()[0].device_kind.lower()
    except Exception:
        pass
    # v6e / v7x MXUs are 2x256x256 -> pack K/lane dim to 256 there;
    # v4 / v5e are 128-wide, keep the native 128.
    if ("v6" in kind) or ("v7" in kind) or ("7x" in kind):
        lane_target = 256
    try:
        vmem_cap = int(pltpu.get_tpu_info().vmem_capacity_bytes)
    except Exception:
        if ("v7" in kind) or ("7x" in kind):
            vmem_cap = 64 << 20
    return lane_target, vmem_cap


# ----------------------------- Pallas kernel -----------------------------
def _film_block_kernel(*refs, eps: float, packed: bool):
    """Fused: h = LN1(x + attn); out = LN2(h + Lin2(relu(Lin1(h)))).

    When `packed` is True, each (row, G*d)-wide tile holds G original rows
    side-by-side in the lane dim; LayerNorm statistics are computed per d-wide
    segment with a block-diagonal averaging matmul, and the FFN weights are
    block-diagonal (built once in pack_film_params), so the per-row math is
    unchanged.
    """
    if packed:
        (x_ref, a_ref, avg_ref, g1_ref, b1_ref, w1_ref, fb1_ref,
         w2_ref, fb2_ref, g2_ref, b2_ref, o_ref) = refs
    else:
        (x_ref, a_ref, g1_ref, b1_ref, w1_ref, fb1_ref,
         w2_ref, fb2_ref, g2_ref, b2_ref, o_ref) = refs
        avg_ref = None

    def layer_norm(h, g, b):
        # Centered variance (numerically robust, unlike E[h^2] - mu^2).
        if packed:
            avg = avg_ref[...]                       # (d_p, d_p) block-diag 1/d
            mu = jnp.dot(h, avg, preferred_element_type=jnp.float32)
            c = h - mu
            var = jnp.dot(c * c, avg, preferred_element_type=jnp.float32)
        else:
            mu = jnp.mean(h, axis=-1, keepdims=True)
            c = h - mu
            var = jnp.mean(c * c, axis=-1, keepdims=True)
        return c * jax.lax.rsqrt(var + eps) * g + b

    # Streams arrive in bf16; all LN / bias / ReLU math is f32.
    x = x_ref[...].astype(jnp.float32)
    a = a_ref[...].astype(jnp.float32)

    # --- residual + LayerNorm 1 (f32) ---
    h = layer_norm(x + a, g1_ref[...], b1_ref[...])

    # --- feed-forward: bf16 inputs on the MXU, f32 accumulation ---
    ff = jnp.dot(h.astype(jnp.bfloat16), w1_ref[...],
                 preferred_element_type=jnp.float32) + fb1_ref[...]
    ff = jnp.maximum(ff, 0.0)
    ff = jnp.dot(ff.astype(jnp.bfloat16), w2_ref[...],
                 preferred_element_type=jnp.float32) + fb2_ref[...]

    # --- residual + LayerNorm 2 (f32) ---
    out = layer_norm(h + ff, g2_ref[...], b2_ref[...])
    o_ref[...] = out.astype(o_ref.dtype)


# ------------------------- plain-JAX fallback path ------------------------
def _jax_block(x, a, p, *, eps=1e-5):
    """Exact f32 path for streams/tails too small to amortize a pallas_call."""
    def ln(h, g, b):
        mu = jnp.mean(h, axis=-1, keepdims=True)
        var = jnp.mean((h - mu) ** 2, axis=-1, keepdims=True)
        return (h - mu) * jax.lax.rsqrt(var + eps) * g + b

    h = ln(x + a, p["ln1_g"][0], p["ln1_b"][0])
    ff = jnp.maximum(h @ p["ff_w1"] + p["ff_b1"][0], 0.0)
    ff = ff @ p["ff_w2"] + p["ff_b2"][0]
    return ln(h + ff, p["ln2_g"][0], p["ln2_b"][0])


# ------------------------ one-time parameter packing ----------------------
def pack_film_params(params, *, lane_target=None):
    """Pre-pack one stream's parameters for the fused kernel (call ONCE).

    Builds bf16 (block-diagonal when lane-packed) FFN weights, lane-tiled LN
    params and the segmented-mean matrix.  Doing this at parameter-load time
    avoids re-running kron/tile/cast HLOs on every forward call.
    """
    if lane_target is None:
        lane_target, _ = _tpu_lane_target_and_vmem()
    d, dff = params["ff_w1"].shape

    if d < lane_target and lane_target % d == 0:
        G = lane_target // d
    else:
        G = 1   # lane-sparse fallback: correct, but a known perf cliff.
    d_p, dff_p = G * d, G * dff

    f32 = jnp.float32
    if G > 1:
        eye = jnp.eye(G, dtype=f32)
        w1_p = jnp.kron(eye, params["ff_w1"].astype(f32)).astype(jnp.bfloat16)
        w2_p = jnp.kron(eye, params["ff_w2"].astype(f32)).astype(jnp.bfloat16)
        fb1_p = jnp.tile(params["ff_b1"].astype(f32), (1, G))
        fb2_p = jnp.tile(params["ff_b2"].astype(f32), (1, G))
        g1_p = jnp.tile(params["ln1_g"].astype(f32), (1, G))
        b1_p = jnp.tile(params["ln1_b"].astype(f32), (1, G))
        g2_p = jnp.tile(params["ln2_g"].astype(f32), (1, G))
        b2_p = jnp.tile(params["ln2_b"].astype(f32), (1, G))
        # Block-diagonal per-segment averaging matrix (segmented LN mean).
        avg = jnp.kron(eye, jnp.full((d, d), 1.0 / d, f32))
    else:
        w1_p = params["ff_w1"].astype(jnp.bfloat16)
        w2_p = params["ff_w2"].astype(jnp.bfloat16)
        fb1_p, fb2_p = params["ff_b1"].astype(f32), params["ff_b2"].astype(f32)
        g1_p, b1_p = params["ln1_g"].astype(f32), params["ln1_b"].astype(f32)
        g2_p, b2_p = params["ln2_g"].astype(f32), params["ln2_b"].astype(f32)
        avg = None

    return {
        "raw": params, "G": G, "d": d, "dff": dff, "d_p": d_p, "dff_p": dff_p,
        "avg": avg, "g1": g1_p, "b1": b1_p, "w1": w1_p, "fb1": fb1_p,
        "w2": w2_p, "fb2": fb2_p, "g2": g2_p, "b2": b2_p,
    }


# ------------------------------ Pallas wrapper -----------------------------
def _film_pallas(x2, a2, p, *, eps):
    """Run the fused kernel on a (rows, d) slab with rows % G == 0."""
    rows, d = x2.shape
    G, d_p, dff_p = p["G"], p["d_p"], p["dff_p"]
    rows_p = rows // G
    packed = G > 1

    # Stream the dominant tensors in bf16 (kernel is HBM-bandwidth bound).
    # The (rows, d) -> (rows_p, G*d) regrouping is a free row-major reshape.
    xp = x2.astype(jnp.bfloat16).reshape(rows_p, d_p)
    ap = a2.astype(jnp.bfloat16).reshape(rows_p, d_p)

    # Row tile: budget against the widest live f32 buffer (the (TM, dff_p) FFN
    # intermediate), multiple of 16 (bf16 sublane packing), and capped so we
    # always get >= 2 grid steps (lets v7x megacore split the parallel axis).
    tile_budget = 8 << 20
    TM = max(16, (tile_budget // (dff_p * 4)) // 16 * 16)
    TM = min(TM, 1024)
    TM = min(TM, _round_up(pl.cdiv(rows_p, 2), 16))
    num_tiles = pl.cdiv(rows_p, TM)

    _, vmem_cap = _tpu_lane_target_and_vmem()

    # ---- VMEM budget (double-buffered IO + resident weights + temporaries) ----
    io_bytes = 3 * 2 * TM * d_p * 2                        # x, attn, out (bf16)
    wgt_bytes = 2 * 2 * d_p * dff_p * 2                    # two bf16 weights
    avg_bytes = (2 * d_p * d_p * 4) if packed else 0
    small_bytes = 2 * (6 * d_p + 2 * dff_p) * 4
    tmp_bytes = TM * (4 * d_p + 2 * dff_p) * 4             # f32 temporaries
    vmem_need = io_bytes + wgt_bytes + avg_bytes + small_bytes + tmp_bytes
    vmem_limit = int(min(max(2 * vmem_need, 16 << 20), int(0.4 * vmem_cap)))

    # ---- cost estimate for the surrounding XLA schedule ----
    gemm_flops = 4 * rows_p * d_p * dff_p
    stat_flops = (8 * rows_p * d_p * d_p) if packed else 0
    ew_flops = 30 * rows_p * d_p
    bytes_accessed = (3 * rows_p * d_p * 2 + 2 * d_p * dff_p * 2
                      + (d_p * d_p * 4 if packed else 0))
    cost = pl.CostEstimate(flops=int(gemm_flops + stat_flops + ew_flops),
                           transcendentals=int(2 * rows),
                           bytes_accessed=int(bytes_accessed))

    # ---- BlockSpecs: row-tiled data, grid-invariant (VMEM-resident) params ----
    row_spec = pl.BlockSpec((TM, d_p), lambda i: (i, 0))

    def resident(shape):
        return pl.BlockSpec(shape, lambda i: (0, 0))

    in_specs = [row_spec, row_spec]
    operands = [xp, ap]
    if packed:
        in_specs.append(resident((d_p, d_p)))
        operands.append(p["avg"])
    in_specs += [
        resident((1, d_p)),      # ln1 gamma
        resident((1, d_p)),      # ln1 beta
        resident((d_p, dff_p)),  # ff W1 (bf16, block-diag if packed)
        resident((1, dff_p)),    # ff b1
        resident((dff_p, d_p)),  # ff W2 (bf16)
        resident((1, d_p)),      # ff b2
        resident((1, d_p)),      # ln2 gamma
        resident((1, d_p)),      # ln2 beta
    ]
    operands += [p["g1"], p["b1"], p["w1"], p["fb1"],
                 p["w2"], p["fb2"], p["g2"], p["b2"]]

    out = pl.pallas_call(
        functools.partial(_film_block_kernel, eps=eps, packed=packed),
        out_shape=jax.ShapeDtypeStruct((rows_p, d_p), jnp.bfloat16),
        grid=(num_tiles,),
        in_specs=in_specs,
        out_specs=row_spec,
        compiler_params=pltpu.CompilerParams(
            dimension_semantics=("parallel",),   # row tiles are independent
            vmem_limit_bytes=vmem_limit),
        cost_estimate=cost,
    )(*operands)

    return out.reshape(rows, d)


def film_block(x, attn_out, packed_params, *, eps=1e-5):
    """Apply the fused residual/LayerNorm/FFN path to one tensor stream."""
    raw = packed_params["raw"]
    d, G = packed_params["d"], packed_params["G"]
    orig_shape = x.shape
    rows = int(np.prod(orig_shape[:-1]))

    if rows < _MIN_ROWS_FOR_PALLAS:
        # Launch + grid overhead would dominate; keep tiny streams in JAX.
        return _jax_block(x, attn_out, raw, eps=eps)

    x2 = x.reshape(rows, d)
    a2 = attn_out.reshape(rows, d)

    rem = rows % G
    main = rows - rem
    if rem:
        x_main, a_main = x2[:main], a2[:main]
    else:
        x_main, a_main = x2, a2

    out_main = _film_pallas(x_main, a_main, packed_params, eps=eps).astype(x.dtype)
    if rem:
        # Peel the tail rows into plain JAX instead of padding the whole stream.
        out_tail = _jax_block(x2[main:], a2[main:], raw, eps=eps).astype(x.dtype)
        out = jnp.concatenate([out_main, out_tail], axis=0)
    else:
        out = out_main
    return out.reshape(orig_shape)


def film_forward(nodes, edges, y, newnodes, newedges, new_y,
                 node_packed, edge_packed, y_packed, *, eps=1e-5):
    """FiLM.forward given the self-attention outputs (dropout = identity)."""
    nodes_out = film_block(nodes, newnodes, node_packed, eps=eps)
    edges_out = film_block(edges, newedges, edge_packed, eps=eps)
    y_out = film_block(y, new_y, y_packed, eps=eps)
    return nodes_out, edges_out, y_out


# ------------------------- references (pure JAX) -------------------------
def _ref_block(x, a, p, eps=1e-5):
    """Module-exact f32 reference."""
    def ln(h, g, b):
        mu = jnp.mean(h, axis=-1, keepdims=True)
        var = jnp.mean((h - mu) ** 2, axis=-1, keepdims=True)
        return (h - mu) / jnp.sqrt(var + eps) * g + b

    h = ln(x + a, p["ln1_g"][0], p["ln1_b"][0])
    ff = jnp.maximum(h @ p["ff_w1"] + p["ff_b1"][0], 0.0)
    ff = ff @ p["ff_w2"] + p["ff_b2"][0]
    return ln(h + ff, p["ln2_g"][0], p["ln2_b"][0])


def _ref_block_kernel_precision(x, a, p, eps=1e-5):
    """Mimics the kernel's precision: bf16 IO, bf16 MXU inputs, f32 LN math."""
    def ln(h, g, b):
        mu = jnp.mean(h, axis=-1, keepdims=True)
        var = jnp.mean((h - mu) ** 2, axis=-1, keepdims=True)
        return (h - mu) * jax.lax.rsqrt(var + eps) * g + b

    f32 = jnp.float32
    xb = x.astype(jnp.bfloat16).astype(f32)
    ab = a.astype(jnp.bfloat16).astype(f32)
    h = ln(xb + ab, p["ln1_g"][0].astype(f32), p["ln1_b"][0].astype(f32))
    ff = jnp.dot(h.astype(jnp.bfloat16), p["ff_w1"].astype(jnp.bfloat16),
                 preferred_element_type=f32) + p["ff_b1"][0]
    ff = jnp.maximum(ff, 0.0)
    ff = jnp.dot(ff.astype(jnp.bfloat16), p["ff_w2"].astype(jnp.bfloat16),
                 preferred_element_type=f32) + p["ff_b2"][0]
    out = ln(h + ff, p["ln2_g"][0].astype(f32), p["ln2_b"][0].astype(f32))
    return out.astype(jnp.bfloat16).astype(x.dtype)


def _make_params(key, d, dff, dtype=jnp.float32):
    k1, k2 = jax.random.split(key)
    scale1 = 1.0 / np.sqrt(d)
    scale2 = 1.0 / np.sqrt(dff)
    return {
        "ln1_g": jnp.ones((1, d), dtype),
        "ln1_b": jnp.zeros((1, d), dtype),
        "ff_w1": (jax.random.normal(k1, (d, dff), dtype) * scale1).astype(dtype),
        "ff_b1": jnp.zeros((1, dff), dtype),
        "ff_w2": (jax.random.normal(k2, (dff, d), dtype) * scale2).astype(dtype),
        "ff_b2": jnp.zeros((1, d), dtype),
        "ln2_g": jnp.ones((1, d), dtype),
        "ln2_b": jnp.zeros((1, d), dtype),
    }


if __name__ == "__main__":
    bs, n = 2, 32
    dx, de, dy = 16, 8, 16
    dim_ffnodes, dim_ffedges, dim_ffy = 64, 32, 64

    key = jax.random.PRNGKey(0)
    ks = jax.random.split(key, 10)

    nodes = jax.random.normal(ks[0], (bs, n, dx), jnp.float32)
    edges = jax.random.normal(ks[1], (bs, n, n, de), jnp.float32)
    y = jax.random.normal(ks[2], (bs, dy), jnp.float32)
    # stand-in for NodeEdgeBlock outputs (see TODO at top)
    newnodes = jax.random.normal(ks[3], (bs, n, dx), jnp.float32)
    newedges = jax.random.normal(ks[4], (bs, n, n, de), jnp.float32)
    new_y = jax.random.normal(ks[5], (bs, dy), jnp.float32)

    node_params = _make_params(ks[6], dx, dim_ffnodes)
    edge_params = _make_params(ks[7], de, dim_ffedges)
    y_params = _make_params(ks[8], dy, dim_ffy)

    # Pack parameters ONCE (kron block-diag FFN weights, tiled LN params,
    # segmented-mean matrix) -- not re-done per forward call.
    node_packed = pack_film_params(node_params)
    edge_packed = pack_film_params(edge_params)
    y_packed = pack_film_params(y_params)

    nodes_o, edges_o, y_o = film_forward(
        nodes, edges, y, newnodes, newedges, new_y,
        node_packed, edge_packed, y_packed)
    jax.block_until_ready((nodes_o, edges_o, y_o))

    # ----- correctness checks -----
    # nodes (64 rows) and y (2 rows) are tiny -> plain-JAX path, exact f32.
    nodes_r = _ref_block(nodes, newnodes, node_params)
    y_r = _ref_block(y, new_y, y_params)
    np.testing.assert_allclose(np.asarray(nodes_o), np.asarray(nodes_r),
                               rtol=1e-5, atol=1e-5)
    np.testing.assert_allclose(np.asarray(y_o), np.asarray(y_r),
                               rtol=1e-5, atol=1e-5)

    # edges (bs*n^2 = 2048 rows) goes through the Pallas kernel (bf16 IO+MXU).
    edges_kp = _ref_block_kernel_precision(edges, newedges, edge_params)
    np.testing.assert_allclose(np.asarray(edges_o), np.asarray(edges_kp),
                               rtol=1e-2, atol=1e-2)
    edges_f32 = _ref_block(edges, newedges, edge_params)   # module-exact f32
    np.testing.assert_allclose(np.asarray(edges_o), np.asarray(edges_f32),
                               rtol=8e-2, atol=8e-2)        # coarse sanity (bf16 path)

    print("KERNEL_OK")
</pallas_src>

<mosaic_0001>
module attributes {stable_mosaic.version = 11 : i64} {
  func.func @_film_block_kernel(%arg0: i32, %arg1: memref<64x128xbf16, #tpu.memory_space<vmem>>, %arg2: memref<64x128xbf16, #tpu.memory_space<vmem>>, %arg3: memref<128x128xf32, #tpu.memory_space<vmem>>, %arg4: memref<1x128xf32, #tpu.memory_space<vmem>>, %arg5: memref<1x128xf32, #tpu.memory_space<vmem>>, %arg6: memref<128x512xbf16, #tpu.memory_space<vmem>>, %arg7: memref<1x512xf32, #tpu.memory_space<vmem>>, %arg8: memref<512x128xbf16, #tpu.memory_space<vmem>>, %arg9: memref<1x128xf32, #tpu.memory_space<vmem>>, %arg10: memref<1x128xf32, #tpu.memory_space<vmem>>, %arg11: memref<1x128xf32, #tpu.memory_space<vmem>>, %arg12: memref<64x128xbf16, #tpu.memory_space<vmem>>) attributes {dimension_semantics = [#tpu.dimension_semantics<parallel>], iteration_bounds = array<i64: 2>, scalar_prefetch = 0 : i64, scratch_operands = 0 : i64, tpu.core_type = #tpu.core_type<tc>, window_params = [{transform_indices = @transform_0, window_bounds = array<i64: 64, 128>}, {transform_indices = @transform_1, window_bounds = array<i64: 64, 128>}, {pipeline_mode = #tpu.pipeline_mode<synchronous>, transform_indices = @transform_2, window_bounds = array<i64: 128, 128>}, {pipeline_mode = #tpu.pipeline_mode<synchronous>, transform_indices = @transform_3, window_bounds = array<i64: 1, 128>}, {pipeline_mode = #tpu.pipeline_mode<synchronous>, transform_indices = @transform_4, window_bounds = array<i64: 1, 128>}, {pipeline_mode = #tpu.pipeline_mode<synchronous>, transform_indices = @transform_5, window_bounds = array<i64: 128, 512>}, {pipeline_mode = #tpu.pipeline_mode<synchronous>, transform_indices = @transform_6, window_bounds = array<i64: 1, 512>}, {pipeline_mode = #tpu.pipeline_mode<synchronous>, transform_indices = @transform_7, window_bounds = array<i64: 512, 128>}, {pipeline_mode = #tpu.pipeline_mode<synchronous>, transform_indices = @transform_8, window_bounds = array<i64: 1, 128>}, {pipeline_mode = #tpu.pipeline_mode<synchronous>, transform_indices = @transform_9, window_bounds = array<i64: 1, 128>}, {pipeline_mode = #tpu.pipeline_mode<synchronous>, transform_indices = @transform_10, window_bounds = array<i64: 1, 128>}, {transform_indices = @transform_11, window_bounds = array<i64: 64, 128>}]} {
    %c0 = arith.constant 0 : index
    %c0_0 = arith.constant 0 : index
    %0 = vector.load %arg1[%c0, %c0_0] : memref<64x128xbf16, #tpu.memory_space<vmem>>, vector<64x128xbf16>
    %1 = arith.extf %0 : vector<64x128xbf16> to vector<64x128xf32>
    %c0_1 = arith.constant 0 : index
    %c0_2 = arith.constant 0 : index
    %2 = vector.load %arg2[%c0_1, %c0_2] : memref<64x128xbf16, #tpu.memory_space<vmem>>, vector<64x128xbf16>
    %3 = arith.extf %2 : vector<64x128xbf16> to vector<64x128xf32>
    %4 = arith.addf %1, %3 : vector<64x128xf32>
    %c0_3 = arith.constant 0 : index
    %c0_4 = arith.constant 0 : index
    %5 = vector.load %arg4[%c0_3, %c0_4] : memref<1x128xf32, #tpu.memory_space<vmem>>, vector<1x128xf32>
    %c0_5 = arith.constant 0 : index
    %c0_6 = arith.constant 0 : index
    %6 = vector.load %arg5[%c0_5, %c0_6] : memref<1x128xf32, #tpu.memory_space<vmem>>, vector<1x128xf32>
    %c0_7 = arith.constant 0 : index
    %c0_8 = arith.constant 0 : index
    %7 = vector.load %arg3[%c0_7, %c0_8] : memref<128x128xf32, #tpu.memory_space<vmem>>, vector<128x128xf32>
    %cst = arith.constant dense<0.000000e+00> : vector<64x128xf32>
    %8 = tpu.matmul %4, %7, %cst {dimension_numbers = #tpu.dot_dimension_numbers<[1], [0], [0], [1], [0, 0, 1, 1], [], []>} : vector<64x128xf32>, vector<128x128xf32>, vector<64x128xf32> -> vector<64x128xf32>
    %9 = arith.subf %4, %8 : vector<64x128xf32>
    %10 = arith.mulf %9, %9 : vector<64x128xf32>
    %cst_9 = arith.constant dense<0.000000e+00> : vector<64x128xf32>
    %11 = tpu.matmul %10, %7, %cst_9 {dimension_numbers = #tpu.dot_dimension_numbers<[1], [0], [0], [1], [0, 0, 1, 1], [], []>} : vector<64x128xf32>, vector<128x128xf32>, vector<64x128xf32> -> vector<64x128xf32>
    %cst_10 = arith.constant 9.99999974E-6 : f32
    %12 = vector.broadcast %cst_10 : f32 to vector<64x128xf32>
    %13 = arith.addf %11, %12 : vector<64x128xf32>
    %14 = math.rsqrt %13 : vector<64x128xf32>
    %15 = arith.mulf %9, %14 : vector<64x128xf32>
    %16 = vector.broadcast %5 : vector<1x128xf32> to vector<64x128xf32>
    %17 = arith.mulf %15, %16 : vector<64x128xf32>
    %18 = vector.broadcast %6 : vector<1x128xf32> to vector<64x128xf32>
    %19 = arith.addf %17, %18 : vector<64x128xf32>
    %20 = arith.truncf %19 : vector<64x128xf32> to vector<64x128xbf16>
    %c0_11 = arith.constant 0 : index
    %c0_12 = arith.constant 0 : index
    %21 = vector.load %arg6[%c0_11, %c0_12] : memref<128x512xbf16, #tpu.memory_space<vmem>>, vector<128x512xbf16>
    %cst_13 = arith.constant dense<0.000000e+00> : vector<64x512xf32>
    %22 = tpu.matmul %20, %21, %cst_13 {dimension_numbers = #tpu.dot_dimension_numbers<[1], [0], [0], [1], [0, 0, 1, 1], [], []>} : vector<64x128xbf16>, vector<128x512xbf16>, vector<64x512xf32> -> vector<64x512xf32>
    %c0_14 = arith.constant 0 : index
    %c0_15 = arith.constant 0 : index
    %23 = vector.load %arg7[%c0_14, %c0_15] : memref<1x512xf32, #tpu.memory_space<vmem>>, vector<1x512xf32>
    %24 = vector.broadcast %23 : vector<1x512xf32> to vector<64x512xf32>
    %25 = arith.addf %22, %24 : vector<64x512xf32>
    %cst_16 = arith.constant 0.000000e+00 : f32
    %26 = vector.broadcast %cst_16 : f32 to vector<64x512xf32>
    %27 = arith.maximumf %25, %26 : vector<64x512xf32>
    %28 = arith.truncf %27 : vector<64x512xf32> to vector<64x512xbf16>
    %c0_17 = arith.constant 0 : index
    %c0_18 = arith.constant 0 : index
    %29 = vector.load %arg8[%c0_17, %c0_18] : memref<512x128xbf16, #tpu.memory_space<vmem>>, vector<512x128xbf16>
    %cst_19 = arith.constant dense<0.000000e+00> : vector<64x128xf32>
    %30 = tpu.matmul %28, %29, %cst_19 {dimension_numbers = #tpu.dot_dimension_numbers<[1], [0], [0], [1], [0, 0, 1, 1], [], []>} : vector<64x512xbf16>, vector<512x128xbf16>, vector<64x128xf32> -> vector<64x128xf32>
    %c0_20 = arith.constant 0 : index
    %c0_21 = arith.constant 0 : index
    %31 = vector.load %arg9[%c0_20, %c0_21] : memref<1x128xf32, #tpu.memory_space<vmem>>, vector<1x128xf32>
    %32 = vector.broadcast %31 : vector<1x128xf32> to vector<64x128xf32>
    %33 = arith.addf %30, %32 : vector<64x128xf32>
    %34 = arith.addf %19, %33 : vector<64x128xf32>
    %c0_22 = arith.constant 0 : index
    %c0_23 = arith.constant 0 : index
    %35 = vector.load %arg10[%c0_22, %c0_23] : memref<1x128xf32, #tpu.memory_space<vmem>>, vector<1x128xf32>
    %c0_24 = arith.constant 0 : index
    %c0_25 = arith.constant 0 : index
    %36 = vector.load %arg11[%c0_24, %c0_25] : memref<1x128xf32, #tpu.memory_space<vmem>>, vector<1x128xf32>
    %c0_26 = arith.constant 0 : index
    %c0_27 = arith.constant 0 : index
    %37 = vector.load %arg3[%c0_26, %c0_27] : memref<128x128xf32, #tpu.memory_space<vmem>>, vector<128x128xf32>
    %cst_28 = arith.constant dense<0.000000e+00> : vector<64x128xf32>
    %38 = tpu.matmul %34, %37, %cst_28 {dimension_numbers = #tpu.dot_dimension_numbers<[1], [0], [0], [1], [0, 0, 1, 1], [], []>} : vector<64x128xf32>, vector<128x128xf32>, vector<64x128xf32> -> vector<64x128xf32>
    %39 = arith.subf %34, %38 : vector<64x128xf32>
    %40 = arith.mulf %39, %39 : vector<64x128xf32>
    %cst_29 = arith.constant dense<0.000000e+00> : vector<64x128xf32>
    %41 = tpu.matmul %40, %37, %cst_29 {dimension_numbers = #tpu.dot_dimension_numbers<[1], [0], [0], [1], [0, 0, 1, 1], [], []>} : vector<64x128xf32>, vector<128x128xf32>, vector<64x128xf32> -> vector<64x128xf32>
    %cst_30 = arith.constant 9.99999974E-6 : f32
    %42 = vector.broadcast %cst_30 : f32 to vector<64x128xf32>
    %43 = arith.addf %41, %42 : vector<64x128xf32>
    %44 = math.rsqrt %43 : vector<64x128xf32>
    %45 = arith.mulf %39, %44 : vector<64x128xf32>
    %46 = vector.broadcast %35 : vector<1x128xf32> to vector<64x128xf32>
    %47 = arith.mulf %45, %46 : vector<64x128xf32>
    %48 = vector.broadcast %36 : vector<1x128xf32> to vector<64x128xf32>
    %49 = arith.addf %47, %48 : vector<64x128xf32>
    %50 = arith.truncf %49 : vector<64x128xf32> to vector<64x128xbf16>
    %c0_31 = arith.constant 0 : index
    %c0_32 = arith.constant 0 : index
    %51 = vector.load %arg12[%c0_31, %c0_32] : memref<64x128xbf16, #tpu.memory_space<vmem>>, vector<64x128xbf16>
    tpu.vector_store %arg12[%c0_31, %c0_32], %50 {strides = array<i32>} : memref<64x128xbf16, #tpu.memory_space<vmem>>, vector<64x128xbf16>,
    return
  }
  func.func @transform_0(%arg0: i32) -> (i32, i32) {
    %c0_i32 = arith.constant 0 : i32
    %c0_i32_0 = arith.constant 0 : i32
    return %arg0, %c0_i32 : i32, i32
  }
  func.func @transform_1(%arg0: i32) -> (i32, i32) {
    %c0_i32 = arith.constant 0 : i32
    %c0_i32_0 = arith.constant 0 : i32
    return %arg0, %c0_i32 : i32, i32
  }
  func.func @transform_2(%arg0: i32) -> (i32, i32) {
    %c0_i32 = arith.constant 0 : i32
    %c0_i32_0 = arith.constant 0 : i32
    %c0_i32_1 = arith.constant 0 : i32
    return %c0_i32, %c0_i32_0 : i32, i32
  }
  func.func @transform_3(%arg0: i32) -> (i32, i32) {
    %c0_i32 = arith.constant 0 : i32
    %c0_i32_0 = arith.constant 0 : i32
    %c0_i32_1 = arith.constant 0 : i32
    return %c0_i32, %c0_i32_0 : i32, i32
  }
  func.func @transform_4(%arg0: i32) -> (i32, i32) {
    %c0_i32 = arith.constant 0 : i32
    %c0_i32_0 = arith.constant 0 : i32
    %c0_i32_1 = arith.constant 0 : i32
    return %c0_i32, %c0_i32_0 : i32, i32
  }
  func.func @transform_5(%arg0: i32) -> (i32, i32) {
    %c0_i32 = arith.constant 0 : i32
    %c0_i32_0 = arith.constant 0 : i32
    %c0_i32_1 = arith.constant 0 : i32
    return %c0_i32, %c0_i32_0 : i32, i32
  }
  func.func @transform_6(%arg0: i32) -> (i32, i32) {
    %c0_i32 = arith.constant 0 : i32
    %c0_i32_0 = arith.constant 0 : i32
    %c0_i32_1 = arith.constant 0 : i32
    return %c0_i32, %c0_i32_0 : i32, i32
  }
  func.func @transform_7(%arg0: i32) -> (i32, i32) {
    %c0_i32 = arith.constant 0 : i32
    %c0_i32_0 = arith.constant 0 : i32
    %c0_i32_1 = arith.constant 0 : i32
    return %c0_i32, %c0_i32_0 : i32, i32
  }
  func.func @transform_8(%arg0: i32) -> (i32, i32) {
    %c0_i32 = arith.constant 0 : i32
    %c0_i32_0 = arith.constant 0 : i32
    %c0_i32_1 = arith.constant 0 : i32
    return %c0_i32, %c0_i32_0 : i32, i32
  }
  func.func @transform_9(%arg0: i32) -> (i32, i32) {
    %c0_i32 = arith.constant 0 : i32
    %c0_i32_0 = arith.constant 0 : i32
    %c0_i32_1 = arith.constant 0 : i32
    return %c0_i32, %c0_i32_0 : i32, i32
  }
  func.func @transform_10(%arg0: i32) -> (i32, i32) {
    %c0_i32 = arith.constant 0 : i32
    %c0_i32_0 = arith.constant 0 : i32
    %c0_i32_1 = arith.constant 0 : i32
    return %c0_i32, %c0_i32_0 : i32, i32
  }
  func.func @transform_11(%arg0: i32) -> (i32, i32) {
    %c0_i32 = arith.constant 0 : i32
    %c0_i32_0 = arith.constant 0 : i32
    return %arg0, %c0_i32 : i32, i32
  }
}

</mosaic_0001>

<llo_original>
// kernel: tpu_custom_call.1
$region0: #{tpu_custom_call.1}
  #allocation0 [shape = 'u32[]', space=smem, size = 0x4, offset = 0x4, fixed_abs, tag = 'smem constant byte address 0x4 - core index']
  #allocation1 [shape = 'u32[72,128]{1,0:T(1,128)}', space=vmem, size = 0x9000, scoped, tag = 'internal scratch']
  %s0 = inlined_call_operand.hbm [shape: bf16[128,128], index: 0, kind: input, shape index: {}]
  %s1 = inlined_call_operand.hbm [shape: bf16[128,128], index: 1, kind: input, shape index: {}]
  %s2 = inlined_call_operand.hbm [shape: f32[128,128], index: 2, kind: input, shape index: {}]
  %s3 = inlined_call_operand.vmem [shape: f32[1,128], index: 3, kind: input, shape index: {}]
  %s4 = inlined_call_operand.hbm [shape: f32[1,128], index: 4, kind: input, shape index: {}]
  %s5 = inlined_call_operand.hbm [shape: bf16[128,512], index: 5, kind: input, shape index: {}]
  %s6 = inlined_call_operand.vmem [shape: f32[1,512], index: 6, kind: input, shape index: {}]
  %s7 = inlined_call_operand.hbm [shape: bf16[512,128], index: 7, kind: input, shape index: {}]
  %s8 = inlined_call_operand.vmem [shape: f32[1,128], index: 8, kind: input, shape index: {}]
  %s9 = inlined_call_operand.vmem [shape: f32[1,128], index: 9, kind: input, shape index: {}]
  %s10 = inlined_call_operand.vmem [shape: f32[1,128], index: 10, kind: input, shape index: {}]
  %s11 = inlined_call_operand.hbm [shape: bf16[128,128], index: 11, kind: output, shape index: {}]
  %s12 = sld [smem:[#allocation0]]
  $region101: #{tpu_custom_call.1} parent=0
    _
  %s14 = ssub.s32 1, %s12
  %s15 = scalar_select 0, %s14, %s12
  $region1: #{tpu_custom_call.1} parent=0
    #allocation2 [shape = 'u8[32768]{0}', space=vmem, size = 0x8000, scoped, tag = 'input window, operand 0']
    #allocation3 [shape = 's32[2]{0}', space=sflag, size = 0x8, scoped, tag = 'scoped memory for tpu_custom_call.1']
    #allocation4 [shape = 's32[2]{0}', space=sflag, size = 0x8, scoped, tag = 'scoped memory for tpu_custom_call.1']
    #allocation5 [shape = 'u8[32768]{0}', space=vmem, size = 0x8000, scoped, tag = 'input window, operand 1']
    #allocation6 [shape = 's32[2]{0}', space=sflag, size = 0x8, scoped, tag = 'scoped memory for tpu_custom_call.1']
    #allocation7 [shape = 'u8[65536]{0}', space=vmem, size = 0x10000, scoped, tag = 'input window, operand 2, single buffered']
    #allocation8 [shape = 'u8[512]{0}', space=vmem, size = 0x400, scoped, tag = 'input window, operand 4, single buffered']
    #allocation9 [shape = 's32[1]{0}', space=sflag, size = 0x4, scoped, tag = 'scoped memory for tpu_custom_call.1']
    #allocation10 [shape = 'u8[131072]{0}', space=vmem, size = 0x20000, scoped, tag = 'input window, operand 5, single buffered']
    #allocation11 [shape = 'u8[131072]{0}', space=vmem, size = 0x20000, scoped, tag = 'input window, operand 7, single buffered']
    #allocation12 [shape = 's32[1]{0}', space=sflag, size = 0x4, scoped, tag = 'scoped memory for tpu_custom_call.1']
    #allocation13 [shape = 'u8[32768]{0}', space=vmem, size = 0x8000, scoped, tag = 'output window, operand 0']
    %16 = vsyncpa [#allocation3], 0
    %s17 = scalar_lea.sflag [#allocation3], 1
    %18 = vsyncpa %s17, 0
    %19 = vsyncpa [#allocation6], 0
    %s20 = scalar_lea.sflag [#allocation6], 1
    %21 = vsyncpa %s20, 0
    %22 = vsyncpa [#allocation9], 0
    %23 = vsyncpa [#allocation12], 0
    %24 = vsyncpa [#allocation4], 0
    %s25 = scalar_lea.sflag [#allocation4], 1
    %26 = vsyncpa %s25, 0
    loop: start=0, step=1, limit=4
    $region2: #{tpu_custom_call.1} parent=1 // loop_pre_header
      _
    $region3: #{tpu_custom_call.1} parent=1 // loop_header
      %s28 = sphi 0, %s32
      %p29 = scmp.ge.s32.totalorder %s28, 4
      %s38 = sphi 0, %s40
      %s41 = sphi 0, %s38
      %s42 = sphi 0, %s41
      %s58 = sphi 0, %s42
      %s64 = sphi 0, %s66
      %s67 = sphi 0, %s64
      %s68 = sphi 0, %s67
      %s84 = sphi 0, %s68
      %s88 = sphi 0, %s88
      %s90 = sphi 0, %s88
      %s91 = sphi 0, %s90
      %s105 = sphi 0, %s91
      %s109 = sphi 0, %s109
      %s111 = sphi 0, %s109
      %s112 = sphi 0, %s111
      %s126 = sphi 0, %s112
      %s130 = sphi 0, %s130
      %s132 = sphi 0, %s130
      %s133 = sphi 0, %s132
      %s147 = sphi 0, %s133
      %s151 = sphi 0, %s151
      %s153 = sphi 0, %s151
      %s154 = sphi 0, %s153
      %s168 = sphi 0, %s154
      %s172 = sphi 0, %s172
      %s174 = sphi 0, %s172
      %s175 = sphi 0, %s174
      %s189 = sphi 0, %s175
      %s193 = sphi 0, %s193
      %s195 = sphi 0, %s193
      %s196 = sphi 0, %s195
      %s210 = sphi 0, %s196
      %s214 = sphi 0, %s214
      %s216 = sphi 0, %s214
      %s217 = sphi 0, %s216
      %s231 = sphi 0, %s217
      %s235 = sphi 0, %s235
      %s237 = sphi 0, %s235
      %s238 = sphi 0, %s237
      %s252 = sphi 0, %s238
      %s256 = sphi 0, %s256
      %s258 = sphi 0, %s256
      %s259 = sphi 0, %s258
      %s273 = sphi 0, %s259
      %s279 = sphi 0, %s281
      %s282 = sphi 0, %s279
      %s283 = sphi 0, %s282
      %s299 = sphi 0, %s283
    $region4: #{tpu_custom_call.1} parent=1 // loop_header_branch
      %31 = sbr.rel (%p29) target = $region8
    $region5: #{tpu_custom_call.1} parent=1 // loop_body
      %s33 = ssub.s32 %s28, 1
      %s34 = ssub.s32 %s28, 2
      %s35 = sadd.s32 %s28, 1
      %s36 = ssub.s32 %s28, %s35
      %p37 = scmp.eq.s32.totalorder %s36, 0
      %s39 = sadd.s32 %s38, 1
      %s40 = scalar_select %p37, %s38, %s39
      %p43 = pneg %p37
      %p44 = scmp.eq.s32.totalorder %s28, 1
      %p45 = por %p43, %p44
      %p46 = scmp.ne.s32.totalorder %s38, %s41
      %p47 = scmp.eq.s32.totalorder %s28, 0
      %p48 = por %p46, %p47
      %p49 = scmp.ne.s32.totalorder %s38, %s41
      %p50 = scmp.eq.s32.totalorder %s33, 1
      %p51 = por %p49, %p50
      %p52 = scmp.ne.s32.totalorder %s41, %s42
      %p53 = scmp.eq.s32.totalorder %s33, 0
      %p54 = por %p52, %p53
      %p55 = scmp.ne.s32.totalorder %s41, %s42
      %p56 = scmp.eq.s32.totalorder %s34, 1
      %p57 = por %p55, %p56
      %p59 = scmp.ne.s32.totalorder %s42, %s58
      %p60 = scmp.eq.s32.totalorder %s34, 0
      %p61 = por %p59, %p60
      %s62 = ssub.s32 %s28, %s35
      %p63 = scmp.eq.s32.totalorder %s62, 0
      %s65 = sadd.s32 %s64, 1
      %s66 = scalar_select %p63, %s64, %s65
      %p69 = pneg %p63
      %p70 = scmp.eq.s32.totalorder %s28, 1
      %p71 = por %p69, %p70
      %p72 = scmp.ne.s32.totalorder %s64, %s67
      %p73 = scmp.eq.s32.totalorder %s28, 0
      %p74 = por %p72, %p73
      %p75 = scmp.ne.s32.totalorder %s64, %s67
      %p76 = scmp.eq.s32.totalorder %s33, 1
      %p77 = por %p75, %p76
      %p78 = scmp.ne.s32.totalorder %s67, %s68
      %p79 = scmp.eq.s32.totalorder %s33, 0
      %p80 = por %p78, %p79
      %p81 = scmp.ne.s32.totalorder %s67, %s68
      %p82 = scmp.eq.s32.totalorder %s34, 1
      %p83 = por %p81, %p82
      %p85 = scmp.ne.s32.totalorder %s68, %s84
      %p86 = scmp.eq.s32.totalorder %s34, 0
      %p87 = por %p85, %p86
      %s89 = sadd.s32 %s88, 1
      %p92 = scmp.eq.s32.totalorder %s28, 1
      %p93 = scmp.ne.s32.totalorder %s88, %s90
      %p94 = scmp.eq.s32.totalorder %s28, 0
      %p95 = por %p93, %p94
      %p96 = scmp.ne.s32.totalorder %s88, %s90
      %p97 = scmp.eq.s32.totalorder %s33, 1
      %p98 = por %p96, %p97
      %p99 = scmp.ne.s32.totalorder %s90, %s91
      %p100 = scmp.eq.s32.totalorder %s33, 0
      %p101 = por %p99, %p100
      %p102 = scmp.ne.s32.totalorder %s90, %s91
      %p103 = scmp.eq.s32.totalorder %s34, 1
      %p104 = por %p102, %p103
      %p106 = scmp.ne.s32.totalorder %s91, %s105
      %p107 = scmp.eq.s32.totalorder %s34, 0
      %p108 = por %p106, %p107
      %s110 = sadd.s32 %s109, 1
      %p113 = scmp.eq.s32.totalorder %s28, 1
      %p114 = scmp.ne.s32.totalorder %s109, %s111
      %p115 = scmp.eq.s32.totalorder %s28, 0
      %p116 = por %p114, %p115
      %p117 = scmp.ne.s32.totalorder %s109, %s111
      %p118 = scmp.eq.s32.totalorder %s33, 1
      %p119 = por %p117, %p118
      %p120 = scmp.ne.s32.totalorder %s111, %s112
      %p121 = scmp.eq.s32.totalorder %s33, 0
      %p122 = por %p120, %p121
      %p123 = scmp.ne.s32.totalorder %s111, %s112
      %p124 = scmp.eq.s32.totalorder %s34, 1
      %p125 = por %p123, %p124
      %p127 = scmp.ne.s32.totalorder %s112, %s126
      %p128 = scmp.eq.s32.totalorder %s34, 0
      %p129 = por %p127, %p128
      %s131 = sadd.s32 %s130, 1
      %p134 = scmp.eq.s32.totalorder %s28, 1
      %p135 = scmp.ne.s32.totalorder %s130, %s132
      %p136 = scmp.eq.s32.totalorder %s28, 0
      %p137 = por %p135, %p136
      %p138 = scmp.ne.s32.totalorder %s130, %s132
      %p139 = scmp.eq.s32.totalorder %s33, 1
      %p140 = por %p138, %p139
      %p141 = scmp.ne.s32.totalorder %s132, %s133
      %p142 = scmp.eq.s32.totalorder %s33, 0
      %p143 = por %p141, %p142
      %p144 = scmp.ne.s32.totalorder %s132, %s133
      %p145 = scmp.eq.s32.totalorder %s34, 1
      %p146 = por %p144, %p145
      %p148 = scmp.ne.s32.totalorder %s133, %s147
      %p149 = scmp.eq.s32.totalorder %s34, 0
      %p150 = por %p148, %p149
      %s152 = sadd.s32 %s151, 1
      %p155 = scmp.eq.s32.totalorder %s28, 1
      %p156 = scmp.ne.s32.totalorder %s151, %s153
      %p157 = scmp.eq.s32.totalorder %s28, 0
      %p158 = por %p156, %p157
      %p159 = scmp.ne.s32.totalorder %s151, %s153
      %p160 = scmp.eq.s32.totalorder %s33, 1
      %p161 = por %p159, %p160
      %p162 = scmp.ne.s32.totalorder %s153, %s154
      %p163 = scmp.eq.s32.totalorder %s33, 0
      %p164 = por %p162, %p163
      %p165 = scmp.ne.s32.totalorder %s153, %s154
      %p166 = scmp.eq.s32.totalorder %s34, 1
      %p167 = por %p165, %p166
      %p169 = scmp.ne.s32.totalorder %s154, %s168
      %p170 = scmp.eq.s32.totalorder %s34, 0
      %p171 = por %p169, %p170
      %s173 = sadd.s32 %s172, 1
      %p176 = scmp.eq.s32.totalorder %s28, 1
      %p177 = scmp.ne.s32.totalorder %s172, %s174
      %p178 = scmp.eq.s32.totalorder %s28, 0
      %p179 = por %p177, %p178
      %p180 = scmp.ne.s32.totalorder %s172, %s174
      %p181 = scmp.eq.s32.totalorder %s33, 1
      %p182 = por %p180, %p181
      %p183 = scmp.ne.s32.totalorder %s174, %s175
      %p184 = scmp.eq.s32.totalorder %s33, 0
      %p185 = por %p183, %p184
      %p186 = scmp.ne.s32.totalorder %s174, %s175
      %p187 = scmp.eq.s32.totalorder %s34, 1
      %p188 = por %p186, %p187
      %p190 = scmp.ne.s32.totalorder %s175, %s189
      %p191 = scmp.eq.s32.totalorder %s34, 0
      %p192 = por %p190, %p191
      %s194 = sadd.s32 %s193, 1
      %p197 = scmp.eq.s32.totalorder %s28, 1
      %p198 = scmp.ne.s32.totalorder %s193, %s195
      %p199 = scmp.eq.s32.totalorder %s28, 0
      %p200 = por %p198, %p199
      %p201 = scmp.ne.s32.totalorder %s193, %s195
      %p202 = scmp.eq.s32.totalorder %s33, 1
      %p203 = por %p201, %p202
      %p204 = scmp.ne.s32.totalorder %s195, %s196
      %p205 = scmp.eq.s32.totalorder %s33, 0
      %p206 = por %p204, %p205
      %p207 = scmp.ne.s32.totalorder %s195, %s196
      %p208 = scmp.eq.s32.totalorder %s34, 1
      %p209 = por %p207, %p208
      %p211 = scmp.ne.s32.totalorder %s196, %s210
      %p212 = scmp.eq.s32.totalorder %s34, 0
      %p213 = por %p211, %p212
      %s215 = sadd.s32 %s214, 1
      %p218 = scmp.eq.s32.totalorder %s28, 1
      %p219 = scmp.ne.s32.totalorder %s214, %s216
      %p220 = scmp.eq.s32.totalorder %s28, 0
      %p221 = por %p219, %p220
      %p222 = scmp.ne.s32.totalorder %s214, %s216
      %p223 = scmp.eq.s32.totalorder %s33, 1
      %p224 = por %p222, %p223
      %p225 = scmp.ne.s32.totalorder %s216, %s217
      %p226 = scmp.eq.s32.totalorder %s33, 0
      %p227 = por %p225, %p226
      %p228 = scmp.ne.s32.totalorder %s216, %s217
      %p229 = scmp.eq.s32.totalorder %s34, 1
      %p230 = por %p228, %p229
      %p232 = scmp.ne.s32.totalorder %s217, %s231
      %p233 = scmp.eq.s32.totalorder %s34, 0
      %p234 = por %p232, %p233
      %s236 = sadd.s32 %s235, 1
      %p239 = scmp.eq.s32.totalorder %s28, 1
      %p240 = scmp.ne.s32.totalorder %s235, %s237
      %p241 = scmp.eq.s32.totalorder %s28, 0
      %p242 = por %p240, %p241
      %p243 = scmp.ne.s32.totalorder %s235, %s237
      %p244 = scmp.eq.s32.totalorder %s33, 1
      %p245 = por %p243, %p244
      %p246 = scmp.ne.s32.totalorder %s237, %s238
      %p247 = scmp.eq.s32.totalorder %s33, 0
      %p248 = por %p246, %p247
      %p249 = scmp.ne.s32.totalorder %s237, %s238
      %p250 = scmp.eq.s32.totalorder %s34, 1
      %p251 = por %p249, %p250
      %p253 = scmp.ne.s32.totalorder %s238, %s252
      %p254 = scmp.eq.s32.totalorder %s34, 0
      %p255 = por %p253, %p254
      %s257 = sadd.s32 %s256, 1
      %p260 = scmp.eq.s32.totalorder %s28, 1
      %p261 = scmp.ne.s32.totalorder %s256, %s258
      %p262 = scmp.eq.s32.totalorder %s28, 0
      %p263 = por %p261, %p262
      %p264 = scmp.ne.s32.totalorder %s256, %s258
      %p265 = scmp.eq.s32.totalorder %s33, 1
      %p266 = por %p264, %p265
      %p267 = scmp.ne.s32.totalorder %s258, %s259
      %p268 = scmp.eq.s32.totalorder %s33, 0
      %p269 = por %p267, %p268
      %p270 = scmp.ne.s32.totalorder %s258, %s259
      %p271 = scmp.eq.s32.totalorder %s34, 1
      %p272 = por %p270, %p271
      %p274 = scmp.ne.s32.totalorder %s259, %s273
      %p275 = scmp.eq.s32.totalorder %s34, 0
      %p276 = por %p274, %p275
      %s277 = ssub.s32 %s28, %s35
      %p278 = scmp.eq.s32.totalorder %s277, 0
      %s280 = sadd.s32 %s279, 1
      %s281 = scalar_select %p278, %s279, %s280
      %p284 = pneg %p278
      %p285 = scmp.eq.s32.totalorder %s28, 1
      %p286 = por %p284, %p285
      %p287 = scmp.ne.s32.totalorder %s279, %s282
      %p288 = scmp.eq.s32.totalorder %s28, 0
      %p289 = por %p287, %p288
      %p290 = scmp.ne.s32.totalorder %s279, %s282
      %p291 = scmp.eq.s32.totalorder %s33, 1
      %p292 = por %p290, %p291
      %p293 = scmp.ne.s32.totalorder %s282, %s283
      %p294 = scmp.eq.s32.totalorder %s33, 0
      %p295 = por %p293, %p294
      %p296 = scmp.ne.s32.totalorder %s282, %s283
      %p297 = scmp.eq.s32.totalorder %s34, 1
      %p298 = por %p296, %p297
      %p300 = scmp.ne.s32.totalorder %s283, %s299
      %p301 = scmp.eq.s32.totalorder %s34, 0
      %p302 = por %p300, %p301
      %p303 = scmp.le.s32.totalorder 1, %s28
      %p304 = scmp.lt.s32.totalorder %s28, 3
      %p305 = pnand %p303, %p304
      %p306 = pneg %p305
      // Predicated region
      $region9: #{tpu_custom_call.1} parent=5 // pred_check
        _
      $region10: #{tpu_custom_call.1} parent=5 // pred_check_branch
        %308 = sbr.rel (%p305) target = $region12
      $region11: #{tpu_custom_call.1} parent=5 // pred_region
        %s309 = ssub.s32 %s28, 1
        // Predicated region
        $region13: #{tpu_custom_call.1} parent=11 // pred_check
          %p310 = pneg %p101
        $region14: #{tpu_custom_call.1} parent=11 // pred_check_branch
          %312 = sbr.rel (%p310) target = $region16
        $region15: #{tpu_custom_call.1} parent=11 // pred_region
          %314 = vsyncadd [#allocation6], 0
          %s315 = sshll.u32 %s2, 4
          %s316 = int_to_ptr.hbm [resolvable:$true] %s315
          %s317 = sshll.u32 [#allocation7], 4
          %s318 = int_to_ptr.vmem [resolvable:$true] %s317
          %323 = dma.hbm_to_vmem [thread:$0]  %s316, 2048, %s318, [#allocation6], 128, 128, 8
        $region16: #{tpu_custom_call.1} parent=11 // pred_fallthru
          _
        // Predicated region
        $region17: #{tpu_custom_call.1} parent=11 // pred_check
          %p324 = pneg %p122
        $region18: #{tpu_custom_call.1} parent=11 // pred_check_branch
          %326 = sbr.rel (%p324) target = $region20
        $region19: #{tpu_custom_call.1} parent=11 // pred_region
          _
        $region20: #{tpu_custom_call.1} parent=11 // pred_fallthru
          _
        // Predicated region
        $region21: #{tpu_custom_call.1} parent=11 // pred_check
          %p327 = pneg %p143
        $region22: #{tpu_custom_call.1} parent=11 // pred_check_branch
          %329 = sbr.rel (%p327) target = $region24
        $region23: #{tpu_custom_call.1} parent=11 // pred_region
          %331 = vsyncadd [#allocation9], 0
          %s333 = sshll.u32 %s4, 4
          %s334 = int_to_ptr.hbm [resolvable:$true] %s333
          %s335 = sshll.u32 [#allocation8], 4
          %s336 = int_to_ptr.vmem [resolvable:$true] %s335
          %338 = dma.hbm_to_vmem [thread:$0]  %s334, 16, %s336, [#allocation9]
        $region24: #{tpu_custom_call.1} parent=11 // pred_fallthru
          _
        // Predicated region
        $region25: #{tpu_custom_call.1} parent=11 // pred_check
          %p339 = pneg %p164
        $region26: #{tpu_custom_call.1} parent=11 // pred_check_branch
          %341 = sbr.rel (%p339) target = $region28
        $region27: #{tpu_custom_call.1} parent=11 // pred_region
          %343 = vsyncadd [#allocation9], 0
          %s344 = sshll.u32 %s5, 4
          %s345 = int_to_ptr.hbm [resolvable:$true] %s344
          %s346 = sshll.u32 [#allocation10], 4
          %s347 = int_to_ptr.vmem [resolvable:$true] %s346
          %352 = dma.hbm_to_vmem [thread:$0]  %s345, 4096, %s347, [#allocation9], 256, 256, 16
        $region28: #{tpu_custom_call.1} parent=11 // pred_fallthru
          _
        // Predicated region
        $region29: #{tpu_custom_call.1} parent=11 // pred_check
          %p353 = pneg %p185
        $region30: #{tpu_custom_call.1} parent=11 // pred_check_branch
          %355 = sbr.rel (%p353) target = $region32
        $region31: #{tpu_custom_call.1} parent=11 // pred_region
          _
        $region32: #{tpu_custom_call.1} parent=11 // pred_fallthru
          _
        // Predicated region
        $region33: #{tpu_custom_call.1} parent=11 // pred_check
          %p356 = pneg %p206
        $region34: #{tpu_custom_call.1} parent=11 // pred_check_branch
          %358 = sbr.rel (%p356) target = $region36
        $region35: #{tpu_custom_call.1} parent=11 // pred_region
          %360 = vsyncadd [#allocation12], 0
          %s361 = sshll.u32 %s7, 4
          %s362 = int_to_ptr.hbm [resolvable:$true] %s361
          %s363 = sshll.u32 [#allocation11], 4
          %s364 = int_to_ptr.vmem [resolvable:$true] %s363
          %369 = dma.hbm_to_vmem [thread:$0]  %s362, 4096, %s364, [#allocation12], 64, 64, 4
        $region36: #{tpu_custom_call.1} parent=11 // pred_fallthru
          _
        // Predicated region
        $region37: #{tpu_custom_call.1} parent=11 // pred_check
          %p370 = pneg %p227
        $region38: #{tpu_custom_call.1} parent=11 // pred_check_branch
          %372 = sbr.rel (%p370) target = $region40
        $region39: #{tpu_custom_call.1} parent=11 // pred_region
          _
        $region40: #{tpu_custom_call.1} parent=11 // pred_fallthru
          _
        // Predicated region
        $region41: #{tpu_custom_call.1} parent=11 // pred_check
          %p373 = pneg %p248
        $region42: #{tpu_custom_call.1} parent=11 // pred_check_branch
          %375 = sbr.rel (%p373) target = $region44
        $region43: #{tpu_custom_call.1} parent=11 // pred_region
          _
        $region44: #{tpu_custom_call.1} parent=11 // pred_fallthru
          _
        // Predicated region
        $region45: #{tpu_custom_call.1} parent=11 // pred_check
          %p376 = pneg %p269
        $region46: #{tpu_custom_call.1} parent=11 // pred_check_branch
          %378 = sbr.rel (%p376) target = $region48
        $region47: #{tpu_custom_call.1} parent=11 // pred_region
          _
        $region48: #{tpu_custom_call.1} parent=11 // pred_fallthru
          _
      $region12: #{tpu_custom_call.1} parent=5 // pred_fallthru
        _
      %p379 = scmp.lt.s32.totalorder %s28, 2
      // Predicated region
      $region49: #{tpu_custom_call.1} parent=5 // pred_check
        %p380 = pneg %p379
      $region50: #{tpu_custom_call.1} parent=5 // pred_check_branch
        %382 = sbr.rel (%p380) target = $region52
      $region51: #{tpu_custom_call.1} parent=5 // pred_region
        // Predicated region
        $region53: #{tpu_custom_call.1} parent=51 // pred_check
          %p383 = pneg %p48
        $region54: #{tpu_custom_call.1} parent=51 // pred_check_branch
          %385 = sbr.rel (%p383) target = $region56
        $region55: #{tpu_custom_call.1} parent=51 // pred_region
          %s386 = sand.u32 %s38, 1
          %s387 = scalar_lea.sflag [#allocation3], %s386
          %s388 = sand.u32 %s38, 1
          %s389 = smul.addr %s388, 32
          %s390 = scalar_lea.vmem [#allocation2], %s389
          %s391 = smul.u32 8, %s28
          %393 = vsyncadd %s387, 0
          %s394 = smul.addr %s391, 4
          %s395 = scalar_lea.hbm %s0, %s394
          %s396 = sshll.u32 %s395, 4
          %s397 = int_to_ptr.hbm [resolvable:$true] %s396
          %s398 = sshll.u32 %s390, 4
          %s399 = int_to_ptr.vmem [resolvable:$true] %s398
          %404 = dma.hbm_to_vmem [thread:$0]  %s397, 512, %s399, %s387, 64, 64, 4
        $region56: #{tpu_custom_call.1} parent=51 // pred_fallthru
          _
        // Predicated region
        $region57: #{tpu_custom_call.1} parent=51 // pred_check
          %p405 = pneg %p74
        $region58: #{tpu_custom_call.1} parent=51 // pred_check_branch
          %407 = sbr.rel (%p405) target = $region60
        $region59: #{tpu_custom_call.1} parent=51 // pred_region
          %s408 = sand.u32 %s28, 1
          %s409 = scalar_lea.sflag [#allocation6], %s408
          %s410 = sand.u32 %s64, 1
          %s411 = smul.addr %s410, 32
          %s412 = scalar_lea.vmem [#allocation5], %s411
          %s413 = smul.u32 8, %s28
          %415 = vsyncadd %s409, 0
          %s416 = smul.addr %s413, 4
          %s417 = scalar_lea.hbm %s1, %s416
          %s418 = sshll.u32 %s417, 4
          %s419 = int_to_ptr.hbm [resolvable:$true] %s418
          %s420 = sshll.u32 %s412, 4
          %s421 = int_to_ptr.vmem [resolvable:$true] %s420
          %426 = dma.hbm_to_vmem [thread:$0]  %s419, 512, %s421, %s409, 64, 64, 4
        $region60: #{tpu_custom_call.1} parent=51 // pred_fallthru
          _
      $region52: #{tpu_custom_call.1} parent=5 // pred_fallthru
        _
      %p427 = scmp.le.s32.totalorder 1, %s28
      %p428 = scmp.lt.s32.totalorder %s28, 3
      %p429 = pnand %p427, %p428
      %p430 = pneg %p429
      // Predicated region
      $region61: #{tpu_custom_call.1} parent=5 // pred_check
        _
      $region62: #{tpu_custom_call.1} parent=5 // pred_check_branch
        %432 = sbr.rel (%p429) target = $region64
      $region63: #{tpu_custom_call.1} parent=5 // pred_region
        %s433 = ssub.s32 %s28, 1
        %s434 = sand.u32 %s41, 1
        %s435 = scalar_lea.sflag [#allocation3], %s434
        %s436 = sand.u32 %s41, 1
        %s437 = smul.addr %s436, 32
        %s438 = scalar_lea.vmem [#allocation2], %s437
        // Predicated region
        $region65: #{tpu_custom_call.1} parent=63 // pred_check
          %p439 = pneg %p54
        $region66: #{tpu_custom_call.1} parent=63 // pred_check_branch
          %441 = sbr.rel (%p439) target = $region68
        $region67: #{tpu_custom_call.1} parent=63 // pred_region
          %443 = dma.done %s435, 512
        $region68: #{tpu_custom_call.1} parent=63 // pred_fallthru
          _
        %s444 = sand.u32 %s33, 1
        %s445 = scalar_lea.sflag [#allocation6], %s444
        %s446 = sand.u32 %s67, 1
        %s447 = smul.addr %s446, 32
        %s448 = scalar_lea.vmem [#allocation5], %s447
        // Predicated region
        $region69: #{tpu_custom_call.1} parent=63 // pred_check
          %p449 = pneg %p80
        $region70: #{tpu_custom_call.1} parent=63 // pred_check_branch
          %451 = sbr.rel (%p449) target = $region72
        $region71: #{tpu_custom_call.1} parent=63 // pred_region
          %453 = dma.done %s445, 512
        $region72: #{tpu_custom_call.1} parent=63 // pred_fallthru
          _
        // Predicated region
        $region73: #{tpu_custom_call.1} parent=63 // pred_check
          %p454 = pneg %p101
        $region74: #{tpu_custom_call.1} parent=63 // pred_check_branch
          %456 = sbr.rel (%p454) target = $region76
        $region75: #{tpu_custom_call.1} parent=63 // pred_region
          %458 = dma.done [#allocation6], 2048
        $region76: #{tpu_custom_call.1} parent=63 // pred_fallthru
          _
        // Predicated region
        $region77: #{tpu_custom_call.1} parent=63 // pred_check
          %p459 = pneg %p143
        $region78: #{tpu_custom_call.1} parent=63 // pred_check_branch
          %461 = sbr.rel (%p459) target = $region80
        $region79: #{tpu_custom_call.1} parent=63 // pred_region
          %463 = dma.done [#allocation9], 16
        $region80: #{tpu_custom_call.1} parent=63 // pred_fallthru
          _
        // Predicated region
        $region81: #{tpu_custom_call.1} parent=63 // pred_check
          %p464 = pneg %p164
        $region82: #{tpu_custom_call.1} parent=63 // pred_check_branch
          %466 = sbr.rel (%p464) target = $region84
        $region83: #{tpu_custom_call.1} parent=63 // pred_region
          %468 = dma.done [#allocation9], 4096
        $region84: #{tpu_custom_call.1} parent=63 // pred_fallthru
          _
        // Predicated region
        $region85: #{tpu_custom_call.1} parent=63 // pred_check
          %p469 = pneg %p206
        $region86: #{tpu_custom_call.1} parent=63 // pred_check_branch
          %471 = sbr.rel (%p469) target = $region88
        $region87: #{tpu_custom_call.1} parent=63 // pred_region
          %473 = dma.done [#allocation12], 4096
        $region88: #{tpu_custom_call.1} parent=63 // pred_fallthru
          _
        %s474 = sand.u32 %s41, 1
        %s475 = scalar_lea.sflag [#allocation3], %s474
        %s476 = sand.u32 %s41, 1
        %s477 = smul.addr %s476, 32
        %s478 = scalar_lea.vmem [#allocation2], %s477
        %p479 = pneg %p54
        %p480 = pneg %p51
        %s481 = sand.u32 %s33, 1
        %s482 = scalar_lea.sflag [#allocation6], %s481
        %s483 = sand.u32 %s67, 1
        %s484 = smul.addr %s483, 32
        %s485 = scalar_lea.vmem [#allocation5], %s484
        %p486 = pneg %p80
        %p487 = pneg %p77
        %p488 = pneg %p101
        %p489 = pneg %p98
        %p490 = pneg %p122
        %p491 = pneg %p119
        %p492 = pneg %p143
        %p493 = pneg %p140
        %p494 = pneg %p164
        %p495 = pneg %p161
        %p496 = pneg %p185
        %p497 = pneg %p182
        %p498 = pneg %p206
        %p499 = pneg %p203
        %p500 = pneg %p227
        %p501 = pneg %p224
        %p502 = pneg %p248
        %p503 = pneg %p245
        %p504 = pneg %p269
        %p505 = pneg %p266
        %p506 = pneg %p295
        %p507 = pneg %p292
        %s508 = sand.u32 %s282, 1
        %s509 = scalar_lea.sflag [#allocation4], %s508
        %s510 = sand.u32 %s282, 1
        %s511 = smul.addr %s510, 32
        %s512 = scalar_lea.vmem [#allocation13], %s511
        %s513 = smul.u32 8, %s33
        %s514 = smul.u32 8, %s33
        %s515 = smul.u32 8, %s33
        %v516 = vld [vmem:[%s438] sm:$0xf]
        %v517 = vld [vmem:[%s438 + $0x4] sm:$0xf]
        %v518 = vld [vmem:[%s438 + $0x8] sm:$0xf]
        %v519 = vld [vmem:[%s438 + $0xc] sm:$0xf]
        %v520 = vld [vmem:[%s438 + $0x10] sm:$0xf]
        %v521 = vld [vmem:[%s438 + $0x14] sm:$0xf]
        %v522 = vld [vmem:[%s438 + $0x18] sm:$0xf]
        %v523 = vld [vmem:[%s438 + $0x1c] sm:$0xf]
        %v524 = vunpack.c.l.bf16 %v516
        %v525 = vunpack.c.l.bf16 %v517
        %v526 = vunpack.c.l.bf16 %v518
        %v527 = vunpack.c.l.bf16 %v519
        %v528 = vunpack.c.l.bf16 %v520
        %v529 = vunpack.c.l.bf16 %v521
        %v530 = vunpack.c.l.bf16 %v522
        %v531 = vunpack.c.l.bf16 %v523
        %v532 = vld [vmem:[%s448] sm:$0xf]
        %v533 = vld [vmem:[%s448 + $0x4] sm:$0xf]
        %v534 = vld [vmem:[%s448 + $0x8] sm:$0xf]
        %v535 = vld [vmem:[%s448 + $0xc] sm:$0xf]
        %v536 = vld [vmem:[%s448 + $0x10] sm:$0xf]
        %v537 = vld [vmem:[%s448 + $0x14] sm:$0xf]
        %v538 = vld [vmem:[%s448 + $0x18] sm:$0xf]
        %v539 = vld [vmem:[%s448 + $0x1c] sm:$0xf]
        %v540 = vunpack.c.l.bf16 %v532
        %v541 = vunpack.c.l.bf16 %v533
        %v542 = vunpack.c.l.bf16 %v534
        %v543 = vunpack.c.l.bf16 %v535
        %v544 = vunpack.c.l.bf16 %v536
        %v545 = vunpack.c.l.bf16 %v537
        %v546 = vunpack.c.l.bf16 %v538
        %v547 = vunpack.c.l.bf16 %v539
        %v548 = vadd.f32 %v524, %v540
        %v549 = vadd.f32 %v525, %v541
        %v550 = vadd.f32 %v526, %v542
        %v551 = vadd.f32 %v527, %v543
        %v552 = vadd.f32 %v528, %v544
        %v553 = vadd.f32 %v529, %v545
        %v554 = vadd.f32 %v530, %v546
        %v555 = vadd.f32 %v531, %v547
        %v556 = vld [vmem:[%s3] sm:$0x1]
        %v557 = vld [vmem:[#allocation8] sm:$0x1]
        %v558 = vld [vmem:[#allocation7] sm:$0xff]
        %v559 = vld [vmem:[#allocation7 + $0x8] sm:$0xff]
        %v560 = vld [vmem:[#allocation7 + $0x10] sm:$0xff]
        %v561 = vld [vmem:[#allocation7 + $0x18] sm:$0xff]
        %v562 = vld [vmem:[#allocation7 + $0x20] sm:$0xff]
        %v563 = vld [vmem:[#allocation7 + $0x28] sm:$0xff]
        %v564 = vld [vmem:[#allocation7 + $0x30] sm:$0xff]
        %v565 = vld [vmem:[#allocation7 + $0x38] sm:$0xff]
        %v566 = vld [vmem:[#allocation7 + $0x40] sm:$0xff]
        %v567 = vld [vmem:[#allocation7 + $0x48] sm:$0xff]
        %v568 = vld [vmem:[#allocation7 + $0x50] sm:$0xff]
        %v569 = vld [vmem:[#allocation7 + $0x58] sm:$0xff]
        %v570 = vld [vmem:[#allocation7 + $0x60] sm:$0xff]
        %v571 = vld [vmem:[#allocation7 + $0x68] sm:$0xff]
        %v572 = vld [vmem:[#allocation7 + $0x70] sm:$0xff]
        %v573 = vld [vmem:[#allocation7 + $0x78] sm:$0xff]
        %574 = vmatpush.msra.mxu0 %v573
        %575 = vmatpush.msra.mxu0 %v572
        %576 = vmatpush.msra.mxu0 %v571
        %577 = vmatpush.msra.mxu0 %v570
        %578 = vmatpush.msra.mxu0 %v569
        %579 = vmatpush.msra.mxu0 %v568
        %580 = vmatpush.msra.mxu0 %v567
        %581 = vmatpush.msra.mxu0 %v566
        %582 = vmatpush.msra.mxu0 %v565
        %583 = vmatpush.msra.mxu0 %v564
        %584 = vmatpush.msra.mxu0 %v563
        %585 = vmatpush.msra.mxu0 %v562
        %586 = vmatpush.msra.mxu0 %v561
        %587 = vmatpush.msra.mxu0 %v560
        %588 = vmatpush.msra.mxu0 %v559
        %589 = vmatpush.msra.mxu0 %v558
        %590 = vmatmul.f32.gmra.mxu0 %v548
        %v591 = vpop.f32.mrf.mxu0
        %v592 = vadd.f32 0.0, %v591
        %593 = vmatmul.f32.gmra.mxu0 %v549
        %v594 = vpop.f32.mrf.mxu0
        %v595 = vadd.f32 0.0, %v594
        %596 = vmatmul.f32.gmra.mxu0 %v550
        %v597 = vpop.f32.mrf.mxu0
        %v598 = vadd.f32 0.0, %v597
        %599 = vmatmul.f32.gmra.mxu0 %v551
        %v600 = vpop.f32.mrf.mxu0
        %v601 = vadd.f32 0.0, %v600
        %602 = vmatmul.f32.gmra.mxu0 %v552
        %v603 = vpop.f32.mrf.mxu0
        %v604 = vadd.f32 0.0, %v603
        %605 = vmatmul.f32.gmra.mxu0 %v553
        %v606 = vpop.f32.mrf.mxu0
        %v607 = vadd.f32 0.0, %v606
        %608 = vmatmul.f32.gmra.mxu0 %v554
        %v609 = vpop.f32.mrf.mxu0
        %v610 = vadd.f32 0.0, %v609
        %611 = vmatmul.f32.gmra.mxu0 %v555
        %v612 = vpop.f32.mrf.mxu0
        %v613 = vadd.f32 0.0, %v612
        %614 = vdwg.mxu0
        %v615 = vsub.f32 %v548, %v592
        %v616 = vsub.f32 %v549, %v595
        %v617 = vsub.f32 %v550, %v598
        %v618 = vsub.f32 %v551, %v601
        %v619 = vsub.f32 %v552, %v604
        %v620 = vsub.f32 %v553, %v607
        %v621 = vsub.f32 %v554, %v610
        %v622 = vsub.f32 %v555, %v613
        %v623 = vmul.f32 %v615, %v615
        %v624 = vmul.f32 %v616, %v616
        %v625 = vmul.f32 %v617, %v617
        %v626 = vmul.f32 %v618, %v618
        %v627 = vmul.f32 %v619, %v619
        %v628 = vmul.f32 %v620, %v620
        %v629 = vmul.f32 %v621, %v621
        %v630 = vmul.f32 %v622, %v622
        %631 = vmatpush.msra.mxu0 %v573
        %632 = vmatpush.msra.mxu0 %v572
        %633 = vmatpush.msra.mxu0 %v571
        %634 = vmatpush.msra.mxu0 %v570
        %635 = vmatpush.msra.mxu0 %v569
        %636 = vmatpush.msra.mxu0 %v568
        %637 = vmatpush.msra.mxu0 %v567
        %638 = vmatpush.msra.mxu0 %v566
        %639 = vmatpush.msra.mxu0 %v565
        %640 = vmatpush.msra.mxu0 %v564
        %641 = vmatpush.msra.mxu0 %v563
        %642 = vmatpush.msra.mxu0 %v562
        %643 = vmatpush.msra.mxu0 %v561
        %644 = vmatpush.msra.mxu0 %v560
        %645 = vmatpush.msra.mxu0 %v559
        %646 = vmatpush.msra.mxu0 %v558
        %647 = vmatmul.f32.gmra.mxu0 %v623
        %v648 = vpop.f32.mrf.mxu0
        %v649 = vadd.f32 1e-05, %v648
        %650 = vmatmul.f32.gmra.mxu0 %v624
        %v651 = vpop.f32.mrf.mxu0
        %v652 = vadd.f32 1e-05, %v651
        %653 = vmatmul.f32.gmra.mxu0 %v625
        %v654 = vpop.f32.mrf.mxu0
        %v655 = vadd.f32 1e-05, %v654
        %656 = vmatmul.f32.gmra.mxu0 %v626
        %v657 = vpop.f32.mrf.mxu0
        %v658 = vadd.f32 1e-05, %v657
        %659 = vmatmul.f32.gmra.mxu0 %v627
        %v660 = vpop.f32.mrf.mxu0
        %v661 = vadd.f32 1e-05, %v660
        %662 = vmatmul.f32.gmra.mxu0 %v628
        %v663 = vpop.f32.mrf.mxu0
        %v664 = vadd.f32 1e-05, %v663
        %665 = vmatmul.f32.gmra.mxu0 %v629
        %v666 = vpop.f32.mrf.mxu0
        %v667 = vadd.f32 1e-05, %v666
        %668 = vmatmul.f32.gmra.mxu0 %v630
        %v669 = vpop.f32.mrf.mxu0
        %v670 = vadd.f32 1e-05, %v669
        %671 = vdwg.mxu0
        %v672 = vrsqrt.pop %v649
        %v673 = vmul.f32 %v672, %v649
        %v674 = vmul.f32 %v673, %v672
        %v675 = vmul.f32 0.5, %v674
        %v676 = vsub.f32 1.5, %v675
        %v677 = vmul.f32 %v672, %v676
        %vm678 = vweird.f32 %v649
        %vm679 = vweird.f32 %v672
        %vm680 = vmor %vm678, %vm679
        %v681 = vsel %vm680, %v672, %v677
        %v682 = vrsqrt.pop %v652
        %v683 = vmul.f32 %v682, %v652
        %v684 = vmul.f32 %v683, %v682
        %v685 = vmul.f32 0.5, %v684
        %v686 = vsub.f32 1.5, %v685
        %v687 = vmul.f32 %v682, %v686
        %vm688 = vweird.f32 %v652
        %vm689 = vweird.f32 %v682
        %vm690 = vmor %vm688, %vm689
        %v691 = vsel %vm690, %v682, %v687
        %v692 = vrsqrt.pop %v655
        %v693 = vmul.f32 %v692, %v655
        %v694 = vmul.f32 %v693, %v692
        %v695 = vmul.f32 0.5, %v694
        %v696 = vsub.f32 1.5, %v695
        %v697 = vmul.f32 %v692, %v696
        %vm698 = vweird.f32 %v655
        %vm699 = vweird.f32 %v692
        %vm700 = vmor %vm698, %vm699
        %v701 = vsel %vm700, %v692, %v697
        %v702 = vrsqrt.pop %v658
        %v703 = vmul.f32 %v702, %v658
        %v704 = vmul.f32 %v703, %v702
        %v705 = vmul.f32 0.5, %v704
        %v706 = vsub.f32 1.5, %v705
        %v707 = vmul.f32 %v702, %v706
        %vm708 = vweird.f32 %v658
        %vm709 = vweird.f32 %v702
        %vm710 = vmor %vm708, %vm709
        %v711 = vsel %vm710, %v702, %v707
        %v712 = vrsqrt.pop %v661
        %v713 = vmul.f32 %v712, %v661
        %v714 = vmul.f32 %v713, %v712
        %v715 = vmul.f32 0.5, %v714
        %v716 = vsub.f32 1.5, %v715
        %v717 = vmul.f32 %v712, %v716
        %vm718 = vweird.f32 %v661
        %vm719 = vweird.f32 %v712
        %vm720 = vmor %vm718, %vm719
        %v721 = vsel %vm720, %v712, %v717
        %v722 = vrsqrt.pop %v664
        %v723 = vmul.f32 %v722, %v664
        %v724 = vmul.f32 %v723, %v722
        %v725 = vmul.f32 0.5, %v724
        %v726 = vsub.f32 1.5, %v725
        %v727 = vmul.f32 %v722, %v726
        %vm728 = vweird.f32 %v664
        %vm729 = vweird.f32 %v722
        %vm730 = vmor %vm728, %vm729
        %v731 = vsel %vm730, %v722, %v727
        %v732 = vrsqrt.pop %v667
        %v733 = vmul.f32 %v732, %v667
        %v734 = vmul.f32 %v733, %v732
        %v735 = vmul.f32 0.5, %v734
        %v736 = vsub.f32 1.5, %v735
        %v737 = vmul.f32 %v732, %v736
        %vm738 = vweird.f32 %v667
        %vm739 = vweird.f32 %v732
        %vm740 = vmor %vm738, %vm739
        %v741 = vsel %vm740, %v732, %v737
        %v742 = vrsqrt.pop %v670
        %v743 = vmul.f32 %v742, %v670
        %v744 = vmul.f32 %v743, %v742
        %v745 = vmul.f32 0.5, %v744
        %v746 = vsub.f32 1.5, %v745
        %v747 = vmul.f32 %v742, %v746
        %vm748 = vweird.f32 %v670
        %vm749 = vweird.f32 %v742
        %vm750 = vmor %vm748, %vm749
        %v751 = vsel %vm750, %v742, %v747
        %v752 = vmul.f32 %v615, %v681
        %v753 = vmul.f32 %v616, %v691
        %v754 = vmul.f32 %v617, %v701
        %v755 = vmul.f32 %v618, %v711
        %v756 = vmul.f32 %v619, %v721
        %v757 = vmul.f32 %v620, %v731
        %v758 = vmul.f32 %v621, %v741
        %v759 = vmul.f32 %v622, %v751
        %v761 = vperm.slane %v556, 0
        %v763 = vmul.f32 %v752, %v761
        %v764 = vmul.f32 %v753, %v761
        %v765 = vmul.f32 %v754, %v761
        %v766 = vmul.f32 %v755, %v761
        %v767 = vmul.f32 %v756, %v761
        %v768 = vmul.f32 %v757, %v761
        %v769 = vmul.f32 %v758, %v761
        %v770 = vmul.f32 %v759, %v761
        %v772 = vperm.slane %v557, 0
        %v774 = vadd.f32 %v763, %v772
        %v775 = vadd.f32 %v764, %v772
        %v776 = vadd.f32 %v765, %v772
        %v777 = vadd.f32 %v766, %v772
        %v778 = vadd.f32 %v767, %v772
        %v779 = vadd.f32 %v768, %v772
        %v780 = vadd.f32 %v769, %v772
        %v781 = vadd.f32 %v770, %v772
        %v782 = vpack.c.bf16 %v775, %v774
        %v783 = vpack.c.bf16 %v777, %v776
        %v784 = vpack.c.bf16 %v779, %v778
        %v785 = vpack.c.bf16 %v781, %v780
        %v786 = vld [vmem:[#allocation10] sm:$0xff]
        %v787 = vld [vmem:[#allocation10 + $0x8] sm:$0xff]
        %v788 = vld [vmem:[#allocation10 + $0x10] sm:$0xff]
        %v789 = vld [vmem:[#allocation10 + $0x18] sm:$0xff]
        %v790 = vld [vmem:[#allocation10 + $0x20] sm:$0xff]
        %v791 = vld [vmem:[#allocation10 + $0x28] sm:$0xff]
        %v792 = vld [vmem:[#allocation10 + $0x30] sm:$0xff]
        %v793 = vld [vmem:[#allocation10 + $0x38] sm:$0xff]
        %v794 = vld [vmem:[#allocation10 + $0x40] sm:$0xff]
        %v795 = vld [vmem:[#allocation10 + $0x48] sm:$0xff]
        %v796 = vld [vmem:[#allocation10 + $0x50] sm:$0xff]
        %v797 = vld [vmem:[#allocation10 + $0x58] sm:$0xff]
        %v798 = vld [vmem:[#allocation10 + $0x60] sm:$0xff]
        %v799 = vld [vmem:[#allocation10 + $0x68] sm:$0xff]
        %v800 = vld [vmem:[#allocation10 + $0x70] sm:$0xff]
        %v801 = vld [vmem:[#allocation10 + $0x78] sm:$0xff]
        %v802 = vld [vmem:[#allocation10 + $0x80] sm:$0xff]
        %v803 = vld [vmem:[#allocation10 + $0x88] sm:$0xff]
        %v804 = vld [vmem:[#allocation10 + $0x90] sm:$0xff]
        %v805 = vld [vmem:[#allocation10 + $0x98] sm:$0xff]
        %v806 = vld [vmem:[#allocation10 + $0xa0] sm:$0xff]
        %v807 = vld [vmem:[#allocation10 + $0xa8] sm:$0xff]
        %v808 = vld [vmem:[#allocation10 + $0xb0] sm:$0xff]
        %v809 = vld [vmem:[#allocation10 + $0xb8] sm:$0xff]
        %v810 = vld [vmem:[#allocation10 + $0xc0] sm:$0xff]
        %v811 = vld [vmem:[#allocation10 + $0xc8] sm:$0xff]
        %v812 = vld [vmem:[#allocation10 + $0xd0] sm:$0xff]
        %v813 = vld [vmem:[#allocation10 + $0xd8] sm:$0xff]
        %v814 = vld [vmem:[#allocation10 + $0xe0] sm:$0xff]
        %v815 = vld [vmem:[#allocation10 + $0xe8] sm:$0xff]
        %v816 = vld [vmem:[#allocation10 + $0xf0] sm:$0xff]
        %v817 = vld [vmem:[#allocation10 + $0xf8] sm:$0xff]
        %v818 = vld [vmem:[%s6] sm:$0xf]
        %v820 = vperm.slane %v818, 0
        %v821 = vperm.slane %v818, 1
        %v822 = vperm.slane %v818, 2
        %v823 = vperm.slane %v818, 3
        %v860 = vunpack.c.l.b16 %v786
        %v861 = vunpack.c.h.b16 %v786
        %v862 = vunpack.c.l.b16 %v787
        %v863 = vunpack.c.h.b16 %v787
        %v864 = vunpack.c.l.b16 %v788
        %v865 = vunpack.c.h.b16 %v788
        %v866 = vunpack.c.l.b16 %v789
        %v867 = vunpack.c.h.b16 %v789
        %v868 = vunpack.c.l.b16 %v790
        %v869 = vunpack.c.h.b16 %v790
        %v870 = vunpack.c.l.b16 %v791
        %v871 = vunpack.c.h.b16 %v791
        %v872 = vunpack.c.l.b16 %v792
        %v873 = vunpack.c.h.b16 %v792
        %v874 = vunpack.c.l.b16 %v793
        %v875 = vunpack.c.h.b16 %v793
        %v876 = vunpack.c.l.b16 %v794
        %v877 = vunpack.c.h.b16 %v794
        %v878 = vunpack.c.l.b16 %v795
        %v879 = vunpack.c.h.b16 %v795
        %v880 = vunpack.c.l.b16 %v796
        %v881 = vunpack.c.h.b16 %v796
        %v882 = vunpack.c.l.b16 %v797
        %v883 = vunpack.c.h.b16 %v797
        %v884 = vunpack.c.l.b16 %v798
        %v885 = vunpack.c.h.b16 %v798
        %v886 = vunpack.c.l.b16 %v799
        %v887 = vunpack.c.h.b16 %v799
        %v888 = vunpack.c.l.b16 %v800
        %v889 = vunpack.c.h.b16 %v800
        %v890 = vunpack.c.l.b16 %v801
        %v891 = vunpack.c.h.b16 %v801
        %v892 = vunpack.c.l.b16 %v802
        %v893 = vunpack.c.h.b16 %v802
        %v894 = vunpack.c.l.b16 %v803
        %v895 = vunpack.c.h.b16 %v803
        %v896 = vunpack.c.l.b16 %v804
        %v897 = vunpack.c.h.b16 %v804
        %v898 = vunpack.c.l.b16 %v805
        %v899 = vunpack.c.h.b16 %v805
        %v900 = vunpack.c.l.b16 %v806
        %v901 = vunpack.c.h.b16 %v806
        %v902 = vunpack.c.l.b16 %v807
        %v903 = vunpack.c.h.b16 %v807
        %v904 = vunpack.c.l.b16 %v808
        %v905 = vunpack.c.h.b16 %v808
        %v906 = vunpack.c.l.b16 %v809
        %v907 = vunpack.c.h.b16 %v809
        %v908 = vunpack.c.l.b16 %v810
        %v909 = vunpack.c.h.b16 %v810
        %v910 = vunpack.c.l.b16 %v811
        %v911 = vunpack.c.h.b16 %v811
        %v912 = vunpack.c.l.b16 %v812
        %v913 = vunpack.c.h.b16 %v812
        %v914 = vunpack.c.l.b16 %v813
        %v915 = vunpack.c.h.b16 %v813
        %v916 = vunpack.c.l.b16 %v814
        %v917 = vunpack.c.h.b16 %v814
        %v918 = vunpack.c.l.b16 %v815
        %v919 = vunpack.c.h.b16 %v815
        %v920 = vunpack.c.l.b16 %v816
        %v921 = vunpack.c.h.b16 %v816
        %v922 = vunpack.c.l.b16 %v817
        %v923 = vunpack.c.h.b16 %v817
        %v924 = vpack.c.b16 %v864, %v860
        %v925 = vpack.c.b16 %v865, %v861
        %v926 = vpack.c.b16 %v866, %v862
        %v927 = vpack.c.b16 %v867, %v863
        %v928 = vpack.c.b16 %v872, %v868
        %v929 = vpack.c.b16 %v873, %v869
        %v930 = vpack.c.b16 %v874, %v870
        %v931 = vpack.c.b16 %v875, %v871
        %v932 = vpack.c.b16 %v880, %v876
        %v933 = vpack.c.b16 %v881, %v877
        %v934 = vpack.c.b16 %v882, %v878
        %v935 = vpack.c.b16 %v883, %v879
        %v936 = vpack.c.b16 %v888, %v884
        %v937 = vpack.c.b16 %v889, %v885
        %v938 = vpack.c.b16 %v890, %v886
        %v939 = vpack.c.b16 %v891, %v887
        %v940 = vpack.c.b16 %v896, %v892
        %v941 = vpack.c.b16 %v897, %v893
        %v942 = vpack.c.b16 %v898, %v894
        %v943 = vpack.c.b16 %v899, %v895
        %v944 = vpack.c.b16 %v904, %v900
        %v945 = vpack.c.b16 %v905, %v901
        %v946 = vpack.c.b16 %v906, %v902
        %v947 = vpack.c.b16 %v907, %v903
        %v948 = vpack.c.b16 %v912, %v908
        %v949 = vpack.c.b16 %v913, %v909
        %v950 = vpack.c.b16 %v914, %v910
        %v951 = vpack.c.b16 %v915, %v911
        %v952 = vpack.c.b16 %v920, %v916
        %v953 = vpack.c.b16 %v921, %v917
        %v954 = vpack.c.b16 %v922, %v918
        %v955 = vpack.c.b16 %v923, %v919
        %988 = vmatpush.bf16.msra.mxu0 %v952
        %989 = vmatpush.bf16.msra.mxu0 %v948
        %990 = vmatpush.bf16.msra.mxu0 %v944
        %991 = vmatpush.bf16.msra.mxu0 %v940
        %992 = vmatpush.bf16.msra.mxu0 %v936
        %993 = vmatpush.bf16.msra.mxu0 %v932
        %994 = vmatpush.bf16.msra.mxu0 %v928
        %995 = vmatpush.bf16.msra.mxu0 %v924
        %996 = vmatmul.bf16.gmra.mxu0 %v782
        %v997 = vpop.f32.mrf.mxu0
        %v998 = vadd.f32 %v820, %v997
        %v999 = vpop.f32.mrf.mxu0
        %v1000 = vadd.f32 %v820, %v999
        %1001 = vmatmul.bf16.gmra.mxu0 %v783
        %v1002 = vpop.f32.mrf.mxu0
        %v1003 = vadd.f32 %v820, %v1002
        %v1004 = vpop.f32.mrf.mxu0
        %v1005 = vadd.f32 %v820, %v1004
        %1006 = vmatmul.bf16.gmra.mxu0 %v784
        %v1007 = vpop.f32.mrf.mxu0
        %v1008 = vadd.f32 %v820, %v1007
        %v1009 = vpop.f32.mrf.mxu0
        %v1010 = vadd.f32 %v820, %v1009
        %1011 = vmatmul.bf16.gmra.mxu0 %v785
        %v1012 = vpop.f32.mrf.mxu0
        %v1013 = vadd.f32 %v820, %v1012
        %v1014 = vpop.f32.mrf.mxu0
        %v1015 = vadd.f32 %v820, %v1014
        %1016 = vdwg.mxu0
        %1017 = vmatpush.bf16.msra.mxu0 %v953
        %1018 = vmatpush.bf16.msra.mxu0 %v949
        %1019 = vmatpush.bf16.msra.mxu0 %v945
        %1020 = vmatpush.bf16.msra.mxu0 %v941
        %1021 = vmatpush.bf16.msra.mxu0 %v937
        %1022 = vmatpush.bf16.msra.mxu0 %v933
        %1023 = vmatpush.bf16.msra.mxu0 %v929
        %1024 = vmatpush.bf16.msra.mxu0 %v925
        %1025 = vmatmul.bf16.gmra.mxu0 %v782
        %v1026 = vpop.f32.mrf.mxu0
        %v1027 = vadd.f32 %v821, %v1026
        %v1028 = vpop.f32.mrf.mxu0
        %v1029 = vadd.f32 %v821, %v1028
        %1030 = vmatmul.bf16.gmra.mxu0 %v783
        %v1031 = vpop.f32.mrf.mxu0
        %v1032 = vadd.f32 %v821, %v1031
        %v1033 = vpop.f32.mrf.mxu0
        %v1034 = vadd.f32 %v821, %v1033
        %1035 = vmatmul.bf16.gmra.mxu0 %v784
        %v1036 = vpop.f32.mrf.mxu0
        %v1037 = vadd.f32 %v821, %v1036
        %v1038 = vpop.f32.mrf.mxu0
        %v1039 = vadd.f32 %v821, %v1038
        %1040 = vmatmul.bf16.gmra.mxu0 %v785
        %v1041 = vpop.f32.mrf.mxu0
        %v1042 = vadd.f32 %v821, %v1041
        %v1043 = vpop.f32.mrf.mxu0
        %v1044 = vadd.f32 %v821, %v1043
        %1045 = vdwg.mxu0
        %1046 = vmatpush.bf16.msra.mxu0 %v954
        %1047 = vmatpush.bf16.msra.mxu0 %v950
        %1048 = vmatpush.bf16.msra.mxu0 %v946
        %1049 = vmatpush.bf16.msra.mxu0 %v942
        %1050 = vmatpush.bf16.msra.mxu0 %v938
        %1051 = vmatpush.bf16.msra.mxu0 %v934
        %1052 = vmatpush.bf16.msra.mxu0 %v930
        %1053 = vmatpush.bf16.msra.mxu0 %v926
        %1054 = vmatmul.bf16.gmra.mxu0 %v782
        %v1055 = vpop.f32.mrf.mxu0
        %v1056 = vadd.f32 %v822, %v1055
        %v1057 = vpop.f32.mrf.mxu0
        %v1058 = vadd.f32 %v822, %v1057
        %1059 = vmatmul.bf16.gmra.mxu0 %v783
        %v1060 = vpop.f32.mrf.mxu0
        %v1061 = vadd.f32 %v822, %v1060
        %v1062 = vpop.f32.mrf.mxu0
        %v1063 = vadd.f32 %v822, %v1062
        %1064 = vmatmul.bf16.gmra.mxu0 %v784
        %v1065 = vpop.f32.mrf.mxu0
        %v1066 = vadd.f32 %v822, %v1065
        %v1067 = vpop.f32.mrf.mxu0
        %v1068 = vadd.f32 %v822, %v1067
        %1069 = vmatmul.bf16.gmra.mxu0 %v785
        %v1070 = vpop.f32.mrf.mxu0
        %v1071 = vadd.f32 %v822, %v1070
        %v1072 = vpop.f32.mrf.mxu0
        %v1073 = vadd.f32 %v822, %v1072
        %1074 = vdwg.mxu0
        %1075 = vmatpush.bf16.msra.mxu0 %v955
        %1076 = vmatpush.bf16.msra.mxu0 %v951
        %1077 = vmatpush.bf16.msra.mxu0 %v947
        %1078 = vmatpush.bf16.msra.mxu0 %v943
        %1079 = vmatpush.bf16.msra.mxu0 %v939
        %1080 = vmatpush.bf16.msra.mxu0 %v935
        %1081 = vmatpush.bf16.msra.mxu0 %v931
        %1082 = vmatpush.bf16.msra.mxu0 %v927
        %1083 = vmatmul.bf16.gmra.mxu0 %v782
        %v1084 = vpop.f32.mrf.mxu0
        %v1085 = vadd.f32 %v823, %v1084
        %v1086 = vpop.f32.mrf.mxu0
        %v1087 = vadd.f32 %v823, %v1086
        %1088 = vmatmul.bf16.gmra.mxu0 %v783
        %v1089 = vpop.f32.mrf.mxu0
        %v1090 = vadd.f32 %v823, %v1089
        %v1091 = vpop.f32.mrf.mxu0
        %v1092 = vadd.f32 %v823, %v1091
        %1093 = vmatmul.bf16.gmra.mxu0 %v784
        %v1094 = vpop.f32.mrf.mxu0
        %v1095 = vadd.f32 %v823, %v1094
        %v1096 = vpop.f32.mrf.mxu0
        %v1097 = vadd.f32 %v823, %v1096
        %1098 = vmatmul.bf16.gmra.mxu0 %v785
        %v1099 = vpop.f32.mrf.mxu0
        %v1100 = vadd.f32 %v823, %v1099
        %v1101 = vpop.f32.mrf.mxu0
        %v1102 = vadd.f32 %v823, %v1101
        %1103 = vdwg.mxu0
        %v1104 = vmax.f32 %v998, 0.0
        %v1105 = vmax.f32 %v1027, 0.0
        %v1106 = vmax.f32 %v1056, 0.0
        %v1107 = vmax.f32 %v1085, 0.0
        %v1108 = vmax.f32 %v1000, 0.0
        %v1109 = vmax.f32 %v1029, 0.0
        %v1110 = vmax.f32 %v1058, 0.0
        %v1111 = vmax.f32 %v1087, 0.0
        %v1112 = vmax.f32 %v1003, 0.0
        %v1113 = vmax.f32 %v1032, 0.0
        %v1114 = vmax.f32 %v1061, 0.0
        %v1115 = vmax.f32 %v1090, 0.0
        %v1116 = vmax.f32 %v1005, 0.0
        %v1117 = vmax.f32 %v1034, 0.0
        %v1118 = vmax.f32 %v1063, 0.0
        %v1119 = vmax.f32 %v1092, 0.0
        %v1120 = vmax.f32 %v1008, 0.0
        %v1121 = vmax.f32 %v1037, 0.0
        %v1122 = vmax.f32 %v1066, 0.0
        %v1123 = vmax.f32 %v1095, 0.0
        %v1124 = vmax.f32 %v1010, 0.0
        %v1125 = vmax.f32 %v1039, 0.0
        %v1126 = vmax.f32 %v1068, 0.0
        %v1127 = vmax.f32 %v1097, 0.0
        %v1128 = vmax.f32 %v1013, 0.0
        %v1129 = vmax.f32 %v1042, 0.0
        %v1130 = vmax.f32 %v1071, 0.0
        %v1131 = vmax.f32 %v1100, 0.0
        %v1132 = vmax.f32 %v1015, 0.0
        %v1133 = vmax.f32 %v1044, 0.0
        %v1134 = vmax.f32 %v1073, 0.0
        %v1135 = vmax.f32 %v1102, 0.0
        %v1136 = vpack.c.bf16 %v1108, %v1104
        %v1137 = vpack.c.bf16 %v1109, %v1105
        %v1138 = vpack.c.bf16 %v1110, %v1106
        %v1139 = vpack.c.bf16 %v1111, %v1107
        %v1140 = vpack.c.bf16 %v1116, %v1112
        %v1141 = vpack.c.bf16 %v1117, %v1113
        %v1142 = vpack.c.bf16 %v1118, %v1114
        %v1143 = vpack.c.bf16 %v1119, %v1115
        %v1144 = vpack.c.bf16 %v1124, %v1120
        %v1145 = vpack.c.bf16 %v1125, %v1121
        %v1146 = vpack.c.bf16 %v1126, %v1122
        %v1147 = vpack.c.bf16 %v1127, %v1123
        %v1148 = vpack.c.bf16 %v1132, %v1128
        %v1149 = vpack.c.bf16 %v1133, %v1129
        %v1150 = vpack.c.bf16 %v1134, %v1130
        %v1151 = vpack.c.bf16 %v1135, %v1131
        %v1152 = vld [vmem:[#allocation11] sm:$0xf]
        %v1153 = vld [vmem:[#allocation11 + $0x4] sm:$0xf]
        %v1154 = vld [vmem:[#allocation11 + $0x8] sm:$0xf]
        %v1155 = vld [vmem:[#allocation11 + $0xc] sm:$0xf]
        %v1156 = vld [vmem:[#allocation11 + $0x10] sm:$0xf]
        %v1157 = vld [vmem:[#allocation11 + $0x14] sm:$0xf]
        %v1158 = vld [vmem:[#allocation11 + $0x18] sm:$0xf]
        %v1159 = vld [vmem:[#allocation11 + $0x1c] sm:$0xf]
        %v1160 = vld [vmem:[#allocation11 + $0x20] sm:$0xf]
        %v1161 = vld [vmem:[#allocation11 + $0x24] sm:$0xf]
        %v1162 = vld [vmem:[#allocation11 + $0x28] sm:$0xf]
        %v1163 = vld [vmem:[#allocation11 + $0x2c] sm:$0xf]
        %v1164 = vld [vmem:[#allocation11 + $0x30] sm:$0xf]
        %v1165 = vld [vmem:[#allocation11 + $0x34] sm:$0xf]
        %v1166 = vld [vmem:[#allocation11 + $0x38] sm:$0xf]
        %v1167 = vld [vmem:[#allocation11 + $0x3c] sm:$0xf]
        %v1168 = vld [vmem:[#allocation11 + $0x40] sm:$0xf]
        %v1169 = vld [vmem:[#allocation11 + $0x44] sm:$0xf]
        %v1170 = vld [vmem:[#allocation11 + $0x48] sm:$0xf]
        %v1171 = vld [vmem:[#allocation11 + $0x4c] sm:$0xf]
        %v1172 = vld [vmem:[#allocation11 + $0x50] sm:$0xf]
        %v1173 = vld [vmem:[#allocation11 + $0x54] sm:$0xf]
        %v1174 = vld [vmem:[#allocation11 + $0x58] sm:$0xf]
        %v1175 = vld [vmem:[#allocation11 + $0x5c] sm:$0xf]
        %v1176 = vld [vmem:[#allocation11 + $0x60] sm:$0xf]
        %v1177 = vld [vmem:[#allocation11 + $0x64] sm:$0xf]
        %v1178 = vld [vmem:[#allocation11 + $0x68] sm:$0xf]
        %v1179 = vld [vmem:[#allocation11 + $0x6c] sm:$0xf]
        %v1180 = vld [vmem:[#allocation11 + $0x70] sm:$0xf]
        %v1181 = vld [vmem:[#allocation11 + $0x74] sm:$0xf]
        %v1182 = vld [vmem:[#allocation11 + $0x78] sm:$0xf]
        %v1183 = vld [vmem:[#allocation11 + $0x7c] sm:$0xf]
        %v1184 = vld [vmem:[#allocation11 + $0x80] sm:$0xf]
        %v1185 = vld [vmem:[#allocation11 + $0x84] sm:$0xf]
        %v1186 = vld [vmem:[#allocation11 + $0x88] sm:$0xf]
        %v1187 = vld [vmem:[#allocation11 + $0x8c] sm:$0xf]
        %v1188 = vld [vmem:[#allocation11 + $0x90] sm:$0xf]
        %v1189 = vld [vmem:[#allocation11 + $0x94] sm:$0xf]
        %v1190 = vld [vmem:[#allocation11 + $0x98] sm:$0xf]
        %v1191 = vld [vmem:[#allocation11 + $0x9c] sm:$0xf]
        %v1192 = vld [vmem:[#allocation11 + $0xa0] sm:$0xf]
        %v1193 = vld [vmem:[#allocation11 + $0xa4] sm:$0xf]
        %v1194 = vld [vmem:[#allocation11 + $0xa8] sm:$0xf]
        %v1195 = vld [vmem:[#allocation11 + $0xac] sm:$0xf]
        %v1196 = vld [vmem:[#allocation11 + $0xb0] sm:$0xf]
        %v1197 = vld [vmem:[#allocation11 + $0xb4] sm:$0xf]
        %v1198 = vld [vmem:[#allocation11 + $0xb8] sm:$0xf]
        %v1199 = vld [vmem:[#allocation11 + $0xbc] sm:$0xf]
        %v1200 = vld [vmem:[#allocation11 + $0xc0] sm:$0xf]
        %v1201 = vld [vmem:[#allocation11 + $0xc4] sm:$0xf]
        %v1202 = vld [vmem:[#allocation11 + $0xc8] sm:$0xf]
        %v1203 = vld [vmem:[#allocation11 + $0xcc] sm:$0xf]
        %v1204 = vld [vmem:[#allocation11 + $0xd0] sm:$0xf]
        %v1205 = vld [vmem:[#allocation11 + $0xd4] sm:$0xf]
        %v1206 = vld [vmem:[#allocation11 + $0xd8] sm:$0xf]
        %v1207 = vld [vmem:[#allocation11 + $0xdc] sm:$0xf]
        %v1208 = vld [vmem:[#allocation11 + $0xe0] sm:$0xf]
        %v1209 = vld [vmem:[#allocation11 + $0xe4] sm:$0xf]
        %v1210 = vld [vmem:[#allocation11 + $0xe8] sm:$0xf]
        %v1211 = vld [vmem:[#allocation11 + $0xec] sm:$0xf]
        %v1212 = vld [vmem:[#allocation11 + $0xf0] sm:$0xf]
        %v1213 = vld [vmem:[#allocation11 + $0xf4] sm:$0xf]
        %v1214 = vld [vmem:[#allocation11 + $0xf8] sm:$0xf]
        %v1215 = vld [vmem:[#allocation11 + $0xfc] sm:$0xf]
        %v1216 = vld [vmem:[%s8] sm:$0x1]
        %v1218 = vperm.slane %v1216, 0
        %v1284 = vunpack.c.l.b16 %v1152
        %v1285 = vunpack.c.l.b16 %v1153
        %v1286 = vunpack.c.l.b16 %v1154
        %v1287 = vunpack.c.l.b16 %v1155
        %v1288 = vunpack.c.l.b16 %v1156
        %v1289 = vunpack.c.l.b16 %v1157
        %v1290 = vunpack.c.l.b16 %v1158
        %v1291 = vunpack.c.l.b16 %v1159
        %v1292 = vunpack.c.l.b16 %v1160
        %v1293 = vunpack.c.l.b16 %v1161
        %v1294 = vunpack.c.l.b16 %v1162
        %v1295 = vunpack.c.l.b16 %v1163
        %v1296 = vunpack.c.l.b16 %v1164
        %v1297 = vunpack.c.l.b16 %v1165
        %v1298 = vunpack.c.l.b16 %v1166
        %v1299 = vunpack.c.l.b16 %v1167
        %v1300 = vunpack.c.l.b16 %v1168
        %v1301 = vunpack.c.l.b16 %v1169
        %v1302 = vunpack.c.l.b16 %v1170
        %v1303 = vunpack.c.l.b16 %v1171
        %v1304 = vunpack.c.l.b16 %v1172
        %v1305 = vunpack.c.l.b16 %v1173
        %v1306 = vunpack.c.l.b16 %v1174
        %v1307 = vunpack.c.l.b16 %v1175
        %v1308 = vunpack.c.l.b16 %v1176
        %v1309 = vunpack.c.l.b16 %v1177
        %v1310 = vunpack.c.l.b16 %v1178
        %v1311 = vunpack.c.l.b16 %v1179
        %v1312 = vunpack.c.l.b16 %v1180
        %v1313 = vunpack.c.l.b16 %v1181
        %v1314 = vunpack.c.l.b16 %v1182
        %v1315 = vunpack.c.l.b16 %v1183
        %v1316 = vunpack.c.l.b16 %v1184
        %v1317 = vunpack.c.l.b16 %v1185
        %v1318 = vunpack.c.l.b16 %v1186
        %v1319 = vunpack.c.l.b16 %v1187
        %v1320 = vunpack.c.l.b16 %v1188
        %v1321 = vunpack.c.l.b16 %v1189
        %v1322 = vunpack.c.l.b16 %v1190
        %v1323 = vunpack.c.l.b16 %v1191
        %v1324 = vunpack.c.l.b16 %v1192
        %v1325 = vunpack.c.l.b16 %v1193
        %v1326 = vunpack.c.l.b16 %v1194
        %v1327 = vunpack.c.l.b16 %v1195
        %v1328 = vunpack.c.l.b16 %v1196
        %v1329 = vunpack.c.l.b16 %v1197
        %v1330 = vunpack.c.l.b16 %v1198
        %v1331 = vunpack.c.l.b16 %v1199
        %v1332 = vunpack.c.l.b16 %v1200
        %v1333 = vunpack.c.l.b16 %v1201
        %v1334 = vunpack.c.l.b16 %v1202
        %v1335 = vunpack.c.l.b16 %v1203
        %v1336 = vunpack.c.l.b16 %v1204
        %v1337 = vunpack.c.l.b16 %v1205
        %v1338 = vunpack.c.l.b16 %v1206
        %v1339 = vunpack.c.l.b16 %v1207
        %v1340 = vunpack.c.l.b16 %v1208
        %v1341 = vunpack.c.l.b16 %v1209
        %v1342 = vunpack.c.l.b16 %v1210
        %v1343 = vunpack.c.l.b16 %v1211
        %v1344 = vunpack.c.l.b16 %v1212
        %v1345 = vunpack.c.l.b16 %v1213
        %v1346 = vunpack.c.l.b16 %v1214
        %v1347 = vunpack.c.l.b16 %v1215
        %v1348 = vpack.c.b16 %v1285, %v1284
        %v1349 = vpack.c.b16 %v1287, %v1286
        %v1350 = vpack.c.b16 %v1289, %v1288
        %v1351 = vpack.c.b16 %v1291, %v1290
        %v1352 = vpack.c.b16 %v1293, %v1292
        %v1353 = vpack.c.b16 %v1295, %v1294
        %v1354 = vpack.c.b16 %v1297, %v1296
        %v1355 = vpack.c.b16 %v1299, %v1298
        %v1356 = vpack.c.b16 %v1301, %v1300
        %v1357 = vpack.c.b16 %v1303, %v1302
        %v1358 = vpack.c.b16 %v1305, %v1304
        %v1359 = vpack.c.b16 %v1307, %v1306
        %v1360 = vpack.c.b16 %v1309, %v1308
        %v1361 = vpack.c.b16 %v1311, %v1310
        %v1362 = vpack.c.b16 %v1313, %v1312
        %v1363 = vpack.c.b16 %v1315, %v1314
        %v1364 = vpack.c.b16 %v1317, %v1316
        %v1365 = vpack.c.b16 %v1319, %v1318
        %v1366 = vpack.c.b16 %v1321, %v1320
        %v1367 = vpack.c.b16 %v1323, %v1322
        %v1368 = vpack.c.b16 %v1325, %v1324
        %v1369 = vpack.c.b16 %v1327, %v1326
        %v1370 = vpack.c.b16 %v1329, %v1328
        %v1371 = vpack.c.b16 %v1331, %v1330
        %v1372 = vpack.c.b16 %v1333, %v1332
        %v1373 = vpack.c.b16 %v1335, %v1334
        %v1374 = vpack.c.b16 %v1337, %v1336
        %v1375 = vpack.c.b16 %v1339, %v1338
        %v1376 = vpack.c.b16 %v1341, %v1340
        %v1377 = vpack.c.b16 %v1343, %v1342
        %v1378 = vpack.c.b16 %v1345, %v1344
        %v1379 = vpack.c.b16 %v1347, %v1346
        %1412 = vmatpush.bf16.msra.mxu0 %v1355
        %1413 = vmatpush.bf16.msra.mxu0 %v1354
        %1414 = vmatpush.bf16.msra.mxu0 %v1353
        %1415 = vmatpush.bf16.msra.mxu0 %v1352
        %1416 = vmatpush.bf16.msra.mxu0 %v1351
        %1417 = vmatpush.bf16.msra.mxu0 %v1350
        %1418 = vmatpush.bf16.msra.mxu0 %v1349
        %1419 = vmatpush.bf16.msra.mxu0 %v1348
        %1420 = vmatmul.bf16.gmra.mxu0 %v1136
        %v1421 = vpop.f32.mrf.mxu0
        %v1422 = vadd.f32 %v1218, %v1421
        %v1423 = vpop.f32.mrf.mxu0
        %v1424 = vadd.f32 %v1218, %v1423
        %1425 = vmatmul.bf16.gmra.mxu0 %v1140
        %v1426 = vpop.f32.mrf.mxu0
        %v1427 = vadd.f32 %v1218, %v1426
        %v1428 = vpop.f32.mrf.mxu0
        %v1429 = vadd.f32 %v1218, %v1428
        %1430 = vmatmul.bf16.gmra.mxu0 %v1144
        %v1431 = vpop.f32.mrf.mxu0
        %v1432 = vadd.f32 %v1218, %v1431
        %v1433 = vpop.f32.mrf.mxu0
        %v1434 = vadd.f32 %v1218, %v1433
        %1435 = vmatmul.bf16.gmra.mxu0 %v1148
        %v1436 = vpop.f32.mrf.mxu0
        %v1437 = vadd.f32 %v1218, %v1436
        %v1438 = vpop.f32.mrf.mxu0
        %v1439 = vadd.f32 %v1218, %v1438
        %1440 = vdwg.mxu0
        %1441 = vmatpush.bf16.msra.mxu0 %v1363
        %1442 = vmatpush.bf16.msra.mxu0 %v1362
        %1443 = vmatpush.bf16.msra.mxu0 %v1361
        %1444 = vmatpush.bf16.msra.mxu0 %v1360
        %1445 = vmatpush.bf16.msra.mxu0 %v1359
        %1446 = vmatpush.bf16.msra.mxu0 %v1358
        %1447 = vmatpush.bf16.msra.mxu0 %v1357
        %1448 = vmatpush.bf16.msra.mxu0 %v1356
        %1449 = vmatmul.bf16.gmra.mxu0 %v1137
        %v1450 = vpop.f32.mrf.mxu0
        %v1451 = vadd.f32 %v1422, %v1450
        %v1452 = vpop.f32.mrf.mxu0
        %v1453 = vadd.f32 %v1424, %v1452
        %1454 = vmatmul.bf16.gmra.mxu0 %v1141
        %v1455 = vpop.f32.mrf.mxu0
        %v1456 = vadd.f32 %v1427, %v1455
        %v1457 = vpop.f32.mrf.mxu0
        %v1458 = vadd.f32 %v1429, %v1457
        %1459 = vmatmul.bf16.gmra.mxu0 %v1145
        %v1460 = vpop.f32.mrf.mxu0
        %v1461 = vadd.f32 %v1432, %v1460
        %v1462 = vpop.f32.mrf.mxu0
        %v1463 = vadd.f32 %v1434, %v1462
        %1464 = vmatmul.bf16.gmra.mxu0 %v1149
        %v1465 = vpop.f32.mrf.mxu0
        %v1466 = vadd.f32 %v1437, %v1465
        %v1467 = vpop.f32.mrf.mxu0
        %v1468 = vadd.f32 %v1439, %v1467
        %1469 = vdwg.mxu0
        %1470 = vmatpush.bf16.msra.mxu0 %v1371
        %1471 = vmatpush.bf16.msra.mxu0 %v1370
        %1472 = vmatpush.bf16.msra.mxu0 %v1369
        %1473 = vmatpush.bf16.msra.mxu0 %v1368
        %1474 = vmatpush.bf16.msra.mxu0 %v1367
        %1475 = vmatpush.bf16.msra.mxu0 %v1366
        %1476 = vmatpush.bf16.msra.mxu0 %v1365
        %1477 = vmatpush.bf16.msra.mxu0 %v1364
        %1478 = vmatmul.bf16.gmra.mxu0 %v1138
        %v1479 = vpop.f32.mrf.mxu0
        %v1480 = vadd.f32 %v1451, %v1479
        %v1481 = vpop.f32.mrf.mxu0
        %v1482 = vadd.f32 %v1453, %v1481
        %1483 = vmatmul.bf16.gmra.mxu0 %v1142
        %v1484 = vpop.f32.mrf.mxu0
        %v1485 = vadd.f32 %v1456, %v1484
        %v1486 = vpop.f32.mrf.mxu0
        %v1487 = vadd.f32 %v1458, %v1486
        %1488 = vmatmul.bf16.gmra.mxu0 %v1146
        %v1489 = vpop.f32.mrf.mxu0
        %v1490 = vadd.f32 %v1461, %v1489
        %v1491 = vpop.f32.mrf.mxu0
        %v1492 = vadd.f32 %v1463, %v1491
        %1493 = vmatmul.bf16.gmra.mxu0 %v1150
        %v1494 = vpop.f32.mrf.mxu0
        %v1495 = vadd.f32 %v1466, %v1494
        %v1496 = vpop.f32.mrf.mxu0
        %v1497 = vadd.f32 %v1468, %v1496
        %1498 = vdwg.mxu0
        %1499 = vmatpush.bf16.msra.mxu0 %v1379
        %1500 = vmatpush.bf16.msra.mxu0 %v1378
        %1501 = vmatpush.bf16.msra.mxu0 %v1377
        %1502 = vmatpush.bf16.msra.mxu0 %v1376
        %1503 = vmatpush.bf16.msra.mxu0 %v1375
        %1504 = vmatpush.bf16.msra.mxu0 %v1374
        %1505 = vmatpush.bf16.msra.mxu0 %v1373
        %1506 = vmatpush.bf16.msra.mxu0 %v1372
        %1507 = vmatmul.bf16.gmra.mxu0 %v1139
        %v1508 = vpop.f32.mrf.mxu0
        %v1509 = vadd.f32 %v1480, %v1508
        %v1510 = vpop.f32.mrf.mxu0
        %v1511 = vadd.f32 %v1482, %v1510
        %1512 = vmatmul.bf16.gmra.mxu0 %v1143
        %v1513 = vpop.f32.mrf.mxu0
        %v1514 = vadd.f32 %v1485, %v1513
        %v1515 = vpop.f32.mrf.mxu0
        %v1516 = vadd.f32 %v1487, %v1515
        %1517 = vmatmul.bf16.gmra.mxu0 %v1147
        %v1518 = vpop.f32.mrf.mxu0
        %v1519 = vadd.f32 %v1490, %v1518
        %v1520 = vpop.f32.mrf.mxu0
        %v1521 = vadd.f32 %v1492, %v1520
        %1522 = vmatmul.bf16.gmra.mxu0 %v1151
        %v1523 = vpop.f32.mrf.mxu0
        %v1524 = vadd.f32 %v1495, %v1523
        %v1525 = vpop.f32.mrf.mxu0
        %v1526 = vadd.f32 %v1497, %v1525
        %1527 = vdwg.mxu0
        %v1528 = vadd.f32 %v774, %v1509
        %v1529 = vadd.f32 %v775, %v1511
        %v1530 = vadd.f32 %v776, %v1514
        %v1531 = vadd.f32 %v777, %v1516
        %v1532 = vadd.f32 %v778, %v1519
        %v1533 = vadd.f32 %v779, %v1521
        %v1534 = vadd.f32 %v780, %v1524
        %v1535 = vadd.f32 %v781, %v1526
        %v1536 = vld [vmem:[%s9] sm:$0x1]
        %v1537 = vld [vmem:[%s10] sm:$0x1]
        %1538 = vmatpush.msra.mxu0 %v573
        %1539 = vmatpush.msra.mxu0 %v572
        %1540 = vmatpush.msra.mxu0 %v571
        %1541 = vmatpush.msra.mxu0 %v570
        %1542 = vmatpush.msra.mxu0 %v569
        %1543 = vmatpush.msra.mxu0 %v568
        %1544 = vmatpush.msra.mxu0 %v567
        %1545 = vmatpush.msra.mxu0 %v566
        %1546 = vmatpush.msra.mxu0 %v565
        %1547 = vmatpush.msra.mxu0 %v564
        %1548 = vmatpush.msra.mxu0 %v563
        %1549 = vmatpush.msra.mxu0 %v562
        %1550 = vmatpush.msra.mxu0 %v561
        %1551 = vmatpush.msra.mxu0 %v560
        %1552 = vmatpush.msra.mxu0 %v559
        %1553 = vmatpush.msra.mxu0 %v558
        %1554 = vmatmul.f32.gmra.mxu0 %v1528
        %v1555 = vpop.f32.mrf.mxu0
        %v1556 = vadd.f32 0.0, %v1555
        %1557 = vmatmul.f32.gmra.mxu0 %v1529
        %v1558 = vpop.f32.mrf.mxu0
        %v1559 = vadd.f32 0.0, %v1558
        %1560 = vmatmul.f32.gmra.mxu0 %v1530
        %v1561 = vpop.f32.mrf.mxu0
        %v1562 = vadd.f32 0.0, %v1561
        %1563 = vmatmul.f32.gmra.mxu0 %v1531
        %v1564 = vpop.f32.mrf.mxu0
        %v1565 = vadd.f32 0.0, %v1564
        %1566 = vmatmul.f32.gmra.mxu0 %v1532
        %v1567 = vpop.f32.mrf.mxu0
        %v1568 = vadd.f32 0.0, %v1567
        %1569 = vmatmul.f32.gmra.mxu0 %v1533
        %v1570 = vpop.f32.mrf.mxu0
        %v1571 = vadd.f32 0.0, %v1570
        %1572 = vmatmul.f32.gmra.mxu0 %v1534
        %v1573 = vpop.f32.mrf.mxu0
        %v1574 = vadd.f32 0.0, %v1573
        %1575 = vmatmul.f32.gmra.mxu0 %v1535
        %v1576 = vpop.f32.mrf.mxu0
        %v1577 = vadd.f32 0.0, %v1576
        %1578 = vdwg.mxu0
        %v1579 = vsub.f32 %v1528, %v1556
        %v1580 = vsub.f32 %v1529, %v1559
        %v1581 = vsub.f32 %v1530, %v1562
        %v1582 = vsub.f32 %v1531, %v1565
        %v1583 = vsub.f32 %v1532, %v1568
        %v1584 = vsub.f32 %v1533, %v1571
        %v1585 = vsub.f32 %v1534, %v1574
        %v1586 = vsub.f32 %v1535, %v1577
        %v1587 = vmul.f32 %v1579, %v1579
        %v1588 = vmul.f32 %v1580, %v1580
        %v1589 = vmul.f32 %v1581, %v1581
        %v1590 = vmul.f32 %v1582, %v1582
        %v1591 = vmul.f32 %v1583, %v1583
        %v1592 = vmul.f32 %v1584, %v1584
        %v1593 = vmul.f32 %v1585, %v1585
        %v1594 = vmul.f32 %v1586, %v1586
        %1595 = vmatpush.msra.mxu0 %v573
        %1596 = vmatpush.msra.mxu0 %v572
        %1597 = vmatpush.msra.mxu0 %v571
        %1598 = vmatpush.msra.mxu0 %v570
        %1599 = vmatpush.msra.mxu0 %v569
        %1600 = vmatpush.msra.mxu0 %v568
        %1601 = vmatpush.msra.mxu0 %v567
        %1602 = vmatpush.msra.mxu0 %v566
        %1603 = vmatpush.msra.mxu0 %v565
        %1604 = vmatpush.msra.mxu0 %v564
        %1605 = vmatpush.msra.mxu0 %v563
        %1606 = vmatpush.msra.mxu0 %v562
        %1607 = vmatpush.msra.mxu0 %v561
        %1608 = vmatpush.msra.mxu0 %v560
        %1609 = vmatpush.msra.mxu0 %v559
        %1610 = vmatpush.msra.mxu0 %v558
        %1611 = vmatmul.f32.gmra.mxu0 %v1587
        %v1612 = vpop.f32.mrf.mxu0
        %v1613 = vadd.f32 1e-05, %v1612
        %1614 = vmatmul.f32.gmra.mxu0 %v1588
        %v1615 = vpop.f32.mrf.mxu0
        %v1616 = vadd.f32 1e-05, %v1615
        %1617 = vmatmul.f32.gmra.mxu0 %v1589
        %v1618 = vpop.f32.mrf.mxu0
        %v1619 = vadd.f32 1e-05, %v1618
        %1620 = vmatmul.f32.gmra.mxu0 %v1590
        %v1621 = vpop.f32.mrf.mxu0
        %v1622 = vadd.f32 1e-05, %v1621
        %1623 = vmatmul.f32.gmra.mxu0 %v1591
        %v1624 = vpop.f32.mrf.mxu0
        %v1625 = vadd.f32 1e-05, %v1624
        %1626 = vmatmul.f32.gmra.mxu0 %v1592
        %v1627 = vpop.f32.mrf.mxu0
        %v1628 = vadd.f32 1e-05, %v1627
        %1629 = vmatmul.f32.gmra.mxu0 %v1593
        %v1630 = vpop.f32.mrf.mxu0
        %v1631 = vadd.f32 1e-05, %v1630
        %1632 = vmatmul.f32.gmra.mxu0 %v1594
        %v1633 = vpop.f32.mrf.mxu0
        %v1634 = vadd.f32 1e-05, %v1633
        %1635 = vdwg.mxu0
        %v1636 = vrsqrt.pop %v1613
        %v1637 = vmul.f32 %v1636, %v1613
        %v1638 = vmul.f32 %v1637, %v1636
        %v1639 = vmul.f32 0.5, %v1638
        %v1640 = vsub.f32 1.5, %v1639
        %v1641 = vmul.f32 %v1636, %v1640
        %vm1642 = vweird.f32 %v1613
        %vm1643 = vweird.f32 %v1636
        %vm1644 = vmor %vm1642, %vm1643
        %v1645 = vsel %vm1644, %v1636, %v1641
        %v1646 = vrsqrt.pop %v1616
        %v1647 = vmul.f32 %v1646, %v1616
        %v1648 = vmul.f32 %v1647, %v1646
        %v1649 = vmul.f32 0.5, %v1648
        %v1650 = vsub.f32 1.5, %v1649
        %v1651 = vmul.f32 %v1646, %v1650
        %vm1652 = vweird.f32 %v1616
        %vm1653 = vweird.f32 %v1646
        %vm1654 = vmor %vm1652, %vm1653
        %v1655 = vsel %vm1654, %v1646, %v1651
        %v1656 = vrsqrt.pop %v1619
        %v1657 = vmul.f32 %v1656, %v1619
        %v1658 = vmul.f32 %v1657, %v1656
        %v1659 = vmul.f32 0.5, %v1658
        %v1660 = vsub.f32 1.5, %v1659
        %v1661 = vmul.f32 %v1656, %v1660
        %vm1662 = vweird.f32 %v1619
        %vm1663 = vweird.f32 %v1656
        %vm1664 = vmor %vm1662, %vm1663
        %v1665 = vsel %vm1664, %v1656, %v1661
        %v1666 = vrsqrt.pop %v1622
        %v1667 = vmul.f32 %v1666, %v1622
        %v1668 = vmul.f32 %v1667, %v1666
        %v1669 = vmul.f32 0.5, %v1668
        %v1670 = vsub.f32 1.5, %v1669
        %v1671 = vmul.f32 %v1666, %v1670
        %vm1672 = vweird.f32 %v1622
        %vm1673 = vweird.f32 %v1666
        %vm1674 = vmor %vm1672, %vm1673
        %v1675 = vsel %vm1674, %v1666, %v1671
        %v1676 = vrsqrt.pop %v1625
        %v1677 = vmul.f32 %v1676, %v1625
        %v1678 = vmul.f32 %v1677, %v1676
        %v1679 = vmul.f32 0.5, %v1678
        %v1680 = vsub.f32 1.5, %v1679
        %v1681 = vmul.f32 %v1676, %v1680
        %vm1682 = vweird.f32 %v1625
        %vm1683 = vweird.f32 %v1676
        %vm1684 = vmor %vm1682, %vm1683
        %v1685 = vsel %vm1684, %v1676, %v1681
        %v1686 = vrsqrt.pop %v1628
        %v1687 = vmul.f32 %v1686, %v1628
        %v1688 = vmul.f32 %v1687, %v1686
        %v1689 = vmul.f32 0.5, %v1688
        %v1690 = vsub.f32 1.5, %v1689
        %v1691 = vmul.f32 %v1686, %v1690
        %vm1692 = vweird.f32 %v1628
        %vm1693 = vweird.f32 %v1686
        %vm1694 = vmor %vm1692, %vm1693
        %v1695 = vsel %vm1694, %v1686, %v1691
        %v1696 = vrsqrt.pop %v1631
        %v1697 = vmul.f32 %v1696, %v1631
        %v1698 = vmul.f32 %v1697, %v1696
        %v1699 = vmul.f32 0.5, %v1698
        %v1700 = vsub.f32 1.5, %v1699
        %v1701 = vmul.f32 %v1696, %v1700
        %vm1702 = vweird.f32 %v1631
        %vm1703 = vweird.f32 %v1696
        %vm1704 = vmor %vm1702, %vm1703
        %v1705 = vsel %vm1704, %v1696, %v1701
        %v1706 = vrsqrt.pop %v1634
        %v1707 = vmul.f32 %v1706, %v1634
        %v1708 = vmul.f32 %v1707, %v1706
        %v1709 = vmul.f32 0.5, %v1708
        %v1710 = vsub.f32 1.5, %v1709
        %v1711 = vmul.f32 %v1706, %v1710
        %vm1712 = vweird.f32 %v1634
        %vm1713 = vweird.f32 %v1706
        %vm1714 = vmor %vm1712, %vm1713
        %v1715 = vsel %vm1714, %v1706, %v1711
        %v1716 = vmul.f32 %v1579, %v1645
        %v1717 = vmul.f32 %v1580, %v1655
        %v1718 = vmul.f32 %v1581, %v1665
        %v1719 = vmul.f32 %v1582, %v1675
        %v1720 = vmul.f32 %v1583, %v1685
        %v1721 = vmul.f32 %v1584, %v1695
        %v1722 = vmul.f32 %v1585, %v1705
        %v1723 = vmul.f32 %v1586, %v1715
        %v1725 = vperm.slane %v1536, 0
        %v1727 = vmul.f32 %v1716, %v1725
        %v1728 = vmul.f32 %v1717, %v1725
        %v1729 = vmul.f32 %v1718, %v1725
        %v1730 = vmul.f32 %v1719, %v1725
        %v1731 = vmul.f32 %v1720, %v1725
        %v1732 = vmul.f32 %v1721, %v1725
        %v1733 = vmul.f32 %v1722, %v1725
        %v1734 = vmul.f32 %v1723, %v1725
        %v1736 = vperm.slane %v1537, 0
        %v1738 = vadd.f32 %v1727, %v1736
        %v1739 = vadd.f32 %v1728, %v1736
        %v1740 = vadd.f32 %v1729, %v1736
        %v1741 = vadd.f32 %v1730, %v1736
        %v1742 = vadd.f32 %v1731, %v1736
        %v1743 = vadd.f32 %v1732, %v1736
        %v1744 = vadd.f32 %v1733, %v1736
        %v1745 = vadd.f32 %v1734, %v1736
        %v1746 = vpack.c.bf16 %v1738, %v1738
        %v1747 = vpack.c.bf16 %v1739, %v1739
        %v1748 = vpack.c.bf16 %v1740, %v1740
        %v1749 = vpack.c.bf16 %v1741, %v1741
        %v1750 = vpack.c.bf16 %v1742, %v1742
        %v1751 = vpack.c.bf16 %v1743, %v1743
        %v1752 = vpack.c.bf16 %v1744, %v1744
        %v1753 = vpack.c.bf16 %v1745, %v1745
        %1754 = vst [vmem:[%s512] sm:$0xf] %v1746
        %1755 = vst [vmem:[%s512 + $0x4] sm:$0xf] %v1747
        %1756 = vst [vmem:[%s512 + $0x8] sm:$0xf] %v1748
        %1757 = vst [vmem:[%s512 + $0xc] sm:$0xf] %v1749
        %1758 = vst [vmem:[%s512 + $0x10] sm:$0xf] %v1750
        %1759 = vst [vmem:[%s512 + $0x14] sm:$0xf] %v1751
        %1760 = vst [vmem:[%s512 + $0x18] sm:$0xf] %v1752
        %1761 = vst [vmem:[%s512 + $0x1c] sm:$0xf] %v1753
        %s1762 = sand.u32 %s282, 1
        %s1763 = scalar_lea.sflag [#allocation4], %s1762
        %s1764 = sand.u32 %s282, 1
        %s1765 = smul.addr %s1764, 32
        %s1766 = scalar_lea.vmem [#allocation13], %s1765
        // Predicated region
        $region89: #{tpu_custom_call.1} parent=63 // pred_check
          %p1767 = pneg %p292
        $region90: #{tpu_custom_call.1} parent=63 // pred_check_branch
          %1769 = sbr.rel (%p1767) target = $region92
        $region91: #{tpu_custom_call.1} parent=63 // pred_region
          %s1770 = smul.u32 8, %s33
          %1772 = vsyncadd %s1763, 0
          %s1773 = smul.addr %s1770, 4
          %s1774 = scalar_lea.hbm %s11, %s1773
          %s1775 = sshll.u32 %s1766, 4
          %s1776 = int_to_ptr.vmem [resolvable:$true] %s1775
          %s1777 = sshll.u32 %s1774, 4
          %s1778 = int_to_ptr.hbm [resolvable:$true] %s1777
          %1783 = dma.vmem_to_hbm [thread:$0]  %s1776, 512, %s1778, %s1763, 64, 64, 4
        $region92: #{tpu_custom_call.1} parent=63 // pred_fallthru
          _
      $region64: #{tpu_custom_call.1} parent=5 // pred_fallthru
        _
      %p1784 = scmp.le.s32.totalorder 2, %s28
      // Predicated region
      $region93: #{tpu_custom_call.1} parent=5 // pred_check
        %p1785 = pneg %p1784
      $region94: #{tpu_custom_call.1} parent=5 // pred_check_branch
        %1787 = sbr.rel (%p1785) target = $region96
      $region95: #{tpu_custom_call.1} parent=5 // pred_region
        %s1788 = ssub.s32 %s28, 2
        // Predicated region
        $region97: #{tpu_custom_call.1} parent=95 // pred_check
          %p1789 = pneg %p298
        $region98: #{tpu_custom_call.1} parent=95 // pred_check_branch
          %1791 = sbr.rel (%p1789) target = $region100
        $region99: #{tpu_custom_call.1} parent=95 // pred_region
          %s1792 = sand.u32 %s283, 1
          %s1793 = scalar_lea.sflag [#allocation4], %s1792
          %s1794 = sand.u32 %s283, 1
          %s1795 = smul.addr %s1794, 32
          %s1796 = scalar_lea.vmem [#allocation13], %s1795
          %1798 = dma.done %s1793, 512
        $region100: #{tpu_custom_call.1} parent=95 // pred_fallthru
          _
      $region96: #{tpu_custom_call.1} parent=5 // pred_fallthru
        _
    $region6: #{tpu_custom_call.1} parent=1 // loop_footer
      %s32 = sadd.s32 1, %s28
    $region7: #{tpu_custom_call.1} parent=1 // loop_footer_branch
      %27 = sbr.rel target = $region3
    $region8: #{tpu_custom_call.1} parent=1 // loop_exit
      _
    %1799 = vsyncpa [#allocation3], 1
    %s1800 = scalar_lea.sflag [#allocation3], 1
    %1801 = vsyncpa %s1800, 1
    %1802 = vsyncpa [#allocation6], 1
    %s1803 = scalar_lea.sflag [#allocation6], 1
    %1804 = vsyncpa %s1803, 1
    %1805 = vsyncpa [#allocation9], 1
    %1806 = vsyncpa [#allocation12], 1
    %1807 = vsyncpa [#allocation4], 1
    %s1808 = scalar_lea.sflag [#allocation4], 1
    %1809 = vsyncpa %s1808, 1

</llo_original>
